<compile_context>
chip_gen: v6e
topology: v6e:2x2x1
jax: 0.10.0
libtpu: 0.0.40
codegen_flags: <defaults>
</compile_context>

<pallas_src>
import functools
import math

import jax
import jax.numpy as jnp
from jax.experimental import pallas as pl
from jax.experimental.pallas import tpu as pltpu


def _mha_kernel(x_ref, wqkv_ref, wo_ref, o_ref, *, bb, L, E, nh, dhead):
    """x_ref: (bb*L, E); wqkv_ref: (E, 3E) with 1/sqrt(dhead) pre-folded into
    the q columns; wo_ref: (E, E) (= wo.T); o_ref: (bb*L, E)."""
    x = x_ref[...]                                                       # (bb*L, E) f32

    # Fused q/k/v projection: one MXU matmul (weights already fused+transposed,
    # scale folded in).
    qkv = jnp.dot(x, wqkv_ref[...], preferred_element_type=jnp.float32)  # (bb*L, 3E)
    qkv = qkv.reshape(bb, L, 3 * E)         # leading-dim split, no data movement

    head_outs = []
    for h in range(nh):                     # nh is small -> static unroll
        lo = h * dhead
        qh = qkv[:, :, lo:lo + dhead]                                    # (bb, L, dhead)
        kh = qkv[:, :, E + lo:E + lo + dhead]                            # (bb, L, dhead)
        vh = qkv[:, :, 2 * E + lo:2 * E + lo + dhead]                    # (bb, L, dhead)

        # Batched einsums contracting on the trailing axis -> no transposes.
        s = jnp.einsum("bqd,bkd->bqk", qh, kh,
                       preferred_element_type=jnp.float32)               # (bb, L, L)
        s = s - jnp.max(s, axis=-1, keepdims=True)                       # f32, stabilized
        p = jnp.exp(s)
        denom = jnp.sum(p, axis=-1, keepdims=True)                       # (bb, L, 1)
        r = pl.reciprocal(denom, approx=True)                            # EUP slot
        r = r * (2.0 - denom * r)                                        # Newton step -> ~f32

        head_outs.append(
            jnp.einsum("bqk,bkd->bqd", p, vh,
                       preferred_element_type=jnp.float32) * r)          # (bb, L, dhead)

    # Lane-axis concat of heads (cheap: E=32 fits one 128-lane vreg group),
    # then a single K=E output-projection matmul instead of nh K=dhead matmuls.
    o = jnp.concatenate(head_outs, axis=-1).reshape(bb * L, E)           # (bb*L, E)
    o_ref[...] = jnp.dot(o, wo_ref[...],
                         preferred_element_type=jnp.float32).astype(o_ref.dtype)


def prepare_mha_weights(wq, wk, wv, wo, nh):
    """One-time weight packing; call at module init, NOT per forward call.

    Weights are PyTorch nn.Linear style (out_features, in_features), bias=False.
    Returns:
      wqkv_t: (E, 3E) fused, pre-transposed q/k/v projection with the attention
              scale 1/sqrt(dhead) folded into the q columns.
      wo_t:   (E, E)  pre-transposed output projection (y = o @ wo_t).
    """
    E = wq.shape[0]
    dhead = E // nh
    scale = 1.0 / math.sqrt(dhead)
    wqkv_t = jnp.concatenate([wq * scale, wk, wv], axis=0).T             # (E, 3E)
    wo_t = wo.T                                                          # (E, E)
    return wqkv_t, wo_t


def _num_tensorcores():
    """Best-effort TensorCores-per-chip (2 on v7x, 1 on v5e/v6e)."""
    try:
        info = pltpu.get_tpu_info()
        for attr in ("num_cores", "tensorcore_count", "core_count", "num_tensorcores"):
            n = getattr(info, attr, None)
            if isinstance(n, int) and n > 0:
                return n
    except Exception:
        pass
    return 1


def mha_forward(x, wqkv_t, wo_t, nh, batch_block=None):
    """Self-attention forward: x (B, L, E) -> (B, L, E), using prepacked weights."""
    B, L, E = x.shape
    assert E % nh == 0
    dhead = E // nh

    if batch_block is None:
        # Single fat grid step on v5e/v6e (1 TC); split across both TCs on v7x.
        ncores = _num_tensorcores()
        if ncores > 1 and B % ncores == 0 and ((B // ncores) * L) % 8 == 0:
            batch_block = B // ncores
        else:
            batch_block = B
    bb = batch_block
    assert B % bb == 0
    n_blocks = B // bb

    x2d = x.reshape(B * L, E)   # kernel sees a plain (tokens, E) slab
    kernel = functools.partial(_mha_kernel, bb=bb, L=L, E=E, nh=nh, dhead=dhead)

    out2d = pl.pallas_call(
        kernel,
        out_shape=jax.ShapeDtypeStruct((B * L, E), x.dtype),
        grid_spec=pltpu.PrefetchScalarGridSpec(
            num_scalar_prefetch=0,
            grid=(n_blocks,),
            in_specs=[
                pl.BlockSpec((bb * L, E), lambda i: (i, 0)),      # token block
                pl.BlockSpec((E, 3 * E), lambda i: (0, 0)),       # fused qkv weight (const)
                pl.BlockSpec((E, E), lambda i: (0, 0)),           # out-proj weight (const)
            ],
            out_specs=pl.BlockSpec((bb * L, E), lambda i: (i, 0)),
        ),
        compiler_params=pltpu.CompilerParams(
            dimension_semantics=("parallel",),
        ),
    )(x2d, wqkv_t, wo_t)
    return out2d.reshape(B, L, E)


def mha_reference(x, wq, wk, wv, wo, nh):
    """Pure-JAX reference mirroring the PyTorch MHA.forward (self-attention)."""
    B, L, E = x.shape
    dhead = E // nh
    q = x @ wq.T
    k = x @ wk.T
    v = x @ wv.T

    def split(t):
        return t.reshape(B, L, nh, dhead).transpose(0, 2, 1, 3)

    q, k, v = split(q), split(k), split(v)
    s = jnp.einsum("bhqd,bhkd->bhqk", q, k) / math.sqrt(dhead)
    p = jax.nn.softmax(s, axis=-1)
    o = jnp.einsum("bhqk,bhkd->bhqd", p, v)
    o = o.transpose(0, 2, 1, 3).reshape(B, L, E)
    return o @ wo.T


if __name__ == "__main__":
    # Module config: nc=32 channels, nh=4 heads (dhead=8), self-attention.
    B, L, nc, nh = 2, 8, 32, 4
    zero_last_layer = False

    key = jax.random.PRNGKey(0)
    kx, kq, kk, kv_, ko = jax.random.split(key, 5)

    # PyTorch-Linear-like init: U(-1/sqrt(fan_in), 1/sqrt(fan_in)), bias=False.
    bound = 1.0 / math.sqrt(nc)
    wq = jax.random.uniform(kq, (nc, nc), jnp.float32, -bound, bound)
    wk = jax.random.uniform(kk, (nc, nc), jnp.float32, -bound, bound)
    wv = jax.random.uniform(kv_, (nc, nc), jnp.float32, -bound, bound)
    wo = jax.random.uniform(ko, (nc, nc), jnp.float32, -bound, bound)
    if zero_last_layer:
        wo = jnp.zeros_like(wo)   # zero_module(self.out)

    x = jax.random.normal(kx, (B, L, nc), jnp.float32)

    # One-time weight packing (module init), hoisted out of the per-call path.
    wqkv_t, wo_t = prepare_mha_weights(wq, wk, wv, wo, nh)
    wqkv_t, wo_t = jax.block_until_ready((wqkv_t, wo_t))

    out = mha_forward(x, wqkv_t, wo_t, nh)
    out = jax.block_until_ready(out)

    ref = mha_reference(x, wq, wk, wv, wo, nh)
    assert out.shape == (B, L, nc)
    # Tolerance leaves headroom for the EUP approximate reciprocal (refined by
    # one Newton step); with approx=False the kernel matches to ~1e-6.
    assert jnp.allclose(out, ref, atol=1e-3, rtol=1e-3), "mismatch vs reference"

    print("KERNEL_OK")
</pallas_src>

<mosaic_0001>
module attributes {stable_mosaic.version = 11 : i64} {
  func.func @_mha_kernel(%arg0: i32, %arg1: memref<16x32xf32, #tpu.memory_space<vmem>>, %arg2: memref<32x96xf32, #tpu.memory_space<vmem>>, %arg3: memref<32x32xf32, #tpu.memory_space<vmem>>, %arg4: memref<16x32xf32, #tpu.memory_space<vmem>>) attributes {dimension_semantics = [#tpu.dimension_semantics<parallel>], iteration_bounds = array<i64: 1>, scalar_prefetch = 0 : i64, scratch_operands = 0 : i64, tpu.core_type = #tpu.core_type<tc>, window_params = [{transform_indices = @transform_0, window_bounds = array<i64: 16, 32>}, {pipeline_mode = #tpu.pipeline_mode<synchronous>, transform_indices = @transform_1, window_bounds = array<i64: 32, 96>}, {pipeline_mode = #tpu.pipeline_mode<synchronous>, transform_indices = @transform_2, window_bounds = array<i64: 32, 32>}, {transform_indices = @transform_3, window_bounds = array<i64: 16, 32>}]} {
    %c0 = arith.constant 0 : index
    %c0_0 = arith.constant 0 : index
    %0 = vector.load %arg1[%c0, %c0_0] : memref<16x32xf32, #tpu.memory_space<vmem>>, vector<16x32xf32>
    %c0_1 = arith.constant 0 : index
    %c0_2 = arith.constant 0 : index
    %1 = vector.load %arg2[%c0_1, %c0_2] : memref<32x96xf32, #tpu.memory_space<vmem>>, vector<32x96xf32>
    %cst = arith.constant dense<0.000000e+00> : vector<16x96xf32>
    %2 = tpu.matmul %0, %1, %cst {dimension_numbers = #tpu.dot_dimension_numbers<[1], [0], [0], [1], [0, 0, 1, 1], [], []>} : vector<16x32xf32>, vector<32x96xf32>, vector<16x96xf32> -> vector<16x96xf32>
    %3 = vector.shape_cast %2 : vector<16x96xf32> to vector<2x8x96xf32>
    %4 = vector.extract_strided_slice %3 {offsets = [0, 0, 0], sizes = [2, 8, 8], strides = [1, 1, 1]} : vector<2x8x96xf32> to vector<2x8x8xf32>
    %5 = vector.extract_strided_slice %3 {offsets = [0, 0, 32], sizes = [2, 8, 8], strides = [1, 1, 1]} : vector<2x8x96xf32> to vector<2x8x8xf32>
    %6 = vector.extract_strided_slice %3 {offsets = [0, 0, 64], sizes = [2, 8, 8], strides = [1, 1, 1]} : vector<2x8x96xf32> to vector<2x8x8xf32>
    "tpu.trace_start"() <{level = 10 : i32, message = "bqd,bkd->bqk"}> : () -> ()
    %cst_3 = arith.constant dense<0.000000e+00> : vector<2x8x8xf32>
    %7 = tpu.matmul %4, %5, %cst_3 {dimension_numbers = #tpu.dot_dimension_numbers<[2], [2], [1], [1], [0, 0, 0, 1, 1, 1], [0], [0]>} : vector<2x8x8xf32>, vector<2x8x8xf32>, vector<2x8x8xf32> -> vector<2x8x8xf32>
    "tpu.trace_stop"() : () -> ()
    %cst_4 = arith.constant dense<0xFF800000> : vector<2x8xf32>
    %8 = vector.multi_reduction <maximumf>, %7, %cst_4 [2] : vector<2x8x8xf32> to vector<2x8xf32>
    %9 = vector.shape_cast %8 : vector<2x8xf32> to vector<2x8x1xf32>
    %10 = vector.broadcast %9 : vector<2x8x1xf32> to vector<2x8x8xf32>
    %11 = arith.subf %7, %10 : vector<2x8x8xf32>
    %12 = math.exp %11 : vector<2x8x8xf32>
    %cst_5 = arith.constant dense<0.000000e+00> : vector<2x8xf32>
    %13 = vector.multi_reduction <add>, %12, %cst_5 [2] : vector<2x8x8xf32> to vector<2x8xf32>
    %14 = vector.shape_cast %13 : vector<2x8xf32> to vector<2x8x1xf32>
    %15 = tpu.reciprocal %14 {approx = true} : vector<2x8x1xf32> -> vector<2x8x1xf32>
    %16 = arith.mulf %14, %15 : vector<2x8x1xf32>
    %cst_6 = arith.constant 2.000000e+00 : f32
    %17 = vector.broadcast %cst_6 : f32 to vector<2x8x1xf32>
    %18 = arith.subf %17, %16 : vector<2x8x1xf32>
    %19 = arith.mulf %15, %18 : vector<2x8x1xf32>
    "tpu.trace_start"() <{level = 10 : i32, message = "bqk,bkd->bqd"}> : () -> ()
    %cst_7 = arith.constant dense<0.000000e+00> : vector<2x8x8xf32>
    %20 = tpu.matmul %12, %6, %cst_7 {dimension_numbers = #tpu.dot_dimension_numbers<[2], [1], [1], [2], [0, 0, 0, 1, 1, 2], [0], [0]>} : vector<2x8x8xf32>, vector<2x8x8xf32>, vector<2x8x8xf32> -> vector<2x8x8xf32>
    "tpu.trace_stop"() : () -> ()
    %21 = vector.broadcast %19 : vector<2x8x1xf32> to vector<2x8x8xf32>
    %22 = arith.mulf %20, %21 : vector<2x8x8xf32>
    %23 = vector.extract_strided_slice %3 {offsets = [0, 0, 8], sizes = [2, 8, 8], strides = [1, 1, 1]} : vector<2x8x96xf32> to vector<2x8x8xf32>
    %24 = vector.extract_strided_slice %3 {offsets = [0, 0, 40], sizes = [2, 8, 8], strides = [1, 1, 1]} : vector<2x8x96xf32> to vector<2x8x8xf32>
    %25 = vector.extract_strided_slice %3 {offsets = [0, 0, 72], sizes = [2, 8, 8], strides = [1, 1, 1]} : vector<2x8x96xf32> to vector<2x8x8xf32>
    "tpu.trace_start"() <{level = 10 : i32, message = "bqd,bkd->bqk"}> : () -> ()
    %cst_8 = arith.constant dense<0.000000e+00> : vector<2x8x8xf32>
    %26 = tpu.matmul %23, %24, %cst_8 {dimension_numbers = #tpu.dot_dimension_numbers<[2], [2], [1], [1], [0, 0, 0, 1, 1, 1], [0], [0]>} : vector<2x8x8xf32>, vector<2x8x8xf32>, vector<2x8x8xf32> -> vector<2x8x8xf32>
    "tpu.trace_stop"() : () -> ()
    %cst_9 = arith.constant dense<0xFF800000> : vector<2x8xf32>
    %27 = vector.multi_reduction <maximumf>, %26, %cst_9 [2] : vector<2x8x8xf32> to vector<2x8xf32>
    %28 = vector.shape_cast %27 : vector<2x8xf32> to vector<2x8x1xf32>
    %29 = vector.broadcast %28 : vector<2x8x1xf32> to vector<2x8x8xf32>
    %30 = arith.subf %26, %29 : vector<2x8x8xf32>
    %31 = math.exp %30 : vector<2x8x8xf32>
    %cst_10 = arith.constant dense<0.000000e+00> : vector<2x8xf32>
    %32 = vector.multi_reduction <add>, %31, %cst_10 [2] : vector<2x8x8xf32> to vector<2x8xf32>
    %33 = vector.shape_cast %32 : vector<2x8xf32> to vector<2x8x1xf32>
    %34 = tpu.reciprocal %33 {approx = true} : vector<2x8x1xf32> -> vector<2x8x1xf32>
    %35 = arith.mulf %33, %34 : vector<2x8x1xf32>
    %cst_11 = arith.constant 2.000000e+00 : f32
    %36 = vector.broadcast %cst_11 : f32 to vector<2x8x1xf32>
    %37 = arith.subf %36, %35 : vector<2x8x1xf32>
    %38 = arith.mulf %34, %37 : vector<2x8x1xf32>
    "tpu.trace_start"() <{level = 10 : i32, message = "bqk,bkd->bqd"}> : () -> ()
    %cst_12 = arith.constant dense<0.000000e+00> : vector<2x8x8xf32>
    %39 = tpu.matmul %31, %25, %cst_12 {dimension_numbers = #tpu.dot_dimension_numbers<[2], [1], [1], [2], [0, 0, 0, 1, 1, 2], [0], [0]>} : vector<2x8x8xf32>, vector<2x8x8xf32>, vector<2x8x8xf32> -> vector<2x8x8xf32>
    "tpu.trace_stop"() : () -> ()
    %40 = vector.broadcast %38 : vector<2x8x1xf32> to vector<2x8x8xf32>
    %41 = arith.mulf %39, %40 : vector<2x8x8xf32>
    %42 = vector.extract_strided_slice %3 {offsets = [0, 0, 16], sizes = [2, 8, 8], strides = [1, 1, 1]} : vector<2x8x96xf32> to vector<2x8x8xf32>
    %43 = vector.extract_strided_slice %3 {offsets = [0, 0, 48], sizes = [2, 8, 8], strides = [1, 1, 1]} : vector<2x8x96xf32> to vector<2x8x8xf32>
    %44 = vector.extract_strided_slice %3 {offsets = [0, 0, 80], sizes = [2, 8, 8], strides = [1, 1, 1]} : vector<2x8x96xf32> to vector<2x8x8xf32>
    "tpu.trace_start"() <{level = 10 : i32, message = "bqd,bkd->bqk"}> : () -> ()
    %cst_13 = arith.constant dense<0.000000e+00> : vector<2x8x8xf32>
    %45 = tpu.matmul %42, %43, %cst_13 {dimension_numbers = #tpu.dot_dimension_numbers<[2], [2], [1], [1], [0, 0, 0, 1, 1, 1], [0], [0]>} : vector<2x8x8xf32>, vector<2x8x8xf32>, vector<2x8x8xf32> -> vector<2x8x8xf32>
    "tpu.trace_stop"() : () -> ()
    %cst_14 = arith.constant dense<0xFF800000> : vector<2x8xf32>
    %46 = vector.multi_reduction <maximumf>, %45, %cst_14 [2] : vector<2x8x8xf32> to vector<2x8xf32>
    %47 = vector.shape_cast %46 : vector<2x8xf32> to vector<2x8x1xf32>
    %48 = vector.broadcast %47 : vector<2x8x1xf32> to vector<2x8x8xf32>
    %49 = arith.subf %45, %48 : vector<2x8x8xf32>
    %50 = math.exp %49 : vector<2x8x8xf32>
    %cst_15 = arith.constant dense<0.000000e+00> : vector<2x8xf32>
    %51 = vector.multi_reduction <add>, %50, %cst_15 [2] : vector<2x8x8xf32> to vector<2x8xf32>
    %52 = vector.shape_cast %51 : vector<2x8xf32> to vector<2x8x1xf32>
    %53 = tpu.reciprocal %52 {approx = true} : vector<2x8x1xf32> -> vector<2x8x1xf32>
    %54 = arith.mulf %52, %53 : vector<2x8x1xf32>
    %cst_16 = arith.constant 2.000000e+00 : f32
    %55 = vector.broadcast %cst_16 : f32 to vector<2x8x1xf32>
    %56 = arith.subf %55, %54 : vector<2x8x1xf32>
    %57 = arith.mulf %53, %56 : vector<2x8x1xf32>
    "tpu.trace_start"() <{level = 10 : i32, message = "bqk,bkd->bqd"}> : () -> ()
    %cst_17 = arith.constant dense<0.000000e+00> : vector<2x8x8xf32>
    %58 = tpu.matmul %50, %44, %cst_17 {dimension_numbers = #tpu.dot_dimension_numbers<[2], [1], [1], [2], [0, 0, 0, 1, 1, 2], [0], [0]>} : vector<2x8x8xf32>, vector<2x8x8xf32>, vector<2x8x8xf32> -> vector<2x8x8xf32>
    "tpu.trace_stop"() : () -> ()
    %59 = vector.broadcast %57 : vector<2x8x1xf32> to vector<2x8x8xf32>
    %60 = arith.mulf %58, %59 : vector<2x8x8xf32>
    %61 = vector.extract_strided_slice %3 {offsets = [0, 0, 24], sizes = [2, 8, 8], strides = [1, 1, 1]} : vector<2x8x96xf32> to vector<2x8x8xf32>
    %62 = vector.extract_strided_slice %3 {offsets = [0, 0, 56], sizes = [2, 8, 8], strides = [1, 1, 1]} : vector<2x8x96xf32> to vector<2x8x8xf32>
    %63 = vector.extract_strided_slice %3 {offsets = [0, 0, 88], sizes = [2, 8, 8], strides = [1, 1, 1]} : vector<2x8x96xf32> to vector<2x8x8xf32>
    "tpu.trace_start"() <{level = 10 : i32, message = "bqd,bkd->bqk"}> : () -> ()
    %cst_18 = arith.constant dense<0.000000e+00> : vector<2x8x8xf32>
    %64 = tpu.matmul %61, %62, %cst_18 {dimension_numbers = #tpu.dot_dimension_numbers<[2], [2], [1], [1], [0, 0, 0, 1, 1, 1], [0], [0]>} : vector<2x8x8xf32>, vector<2x8x8xf32>, vector<2x8x8xf32> -> vector<2x8x8xf32>
    "tpu.trace_stop"() : () -> ()
    %cst_19 = arith.constant dense<0xFF800000> : vector<2x8xf32>
    %65 = vector.multi_reduction <maximumf>, %64, %cst_19 [2] : vector<2x8x8xf32> to vector<2x8xf32>
    %66 = vector.shape_cast %65 : vector<2x8xf32> to vector<2x8x1xf32>
    %67 = vector.broadcast %66 : vector<2x8x1xf32> to vector<2x8x8xf32>
    %68 = arith.subf %64, %67 : vector<2x8x8xf32>
    %69 = math.exp %68 : vector<2x8x8xf32>
    %cst_20 = arith.constant dense<0.000000e+00> : vector<2x8xf32>
    %70 = vector.multi_reduction <add>, %69, %cst_20 [2] : vector<2x8x8xf32> to vector<2x8xf32>
    %71 = vector.shape_cast %70 : vector<2x8xf32> to vector<2x8x1xf32>
    %72 = tpu.reciprocal %71 {approx = true} : vector<2x8x1xf32> -> vector<2x8x1xf32>
    %73 = arith.mulf %71, %72 : vector<2x8x1xf32>
    %cst_21 = arith.constant 2.000000e+00 : f32
    %74 = vector.broadcast %cst_21 : f32 to vector<2x8x1xf32>
    %75 = arith.subf %74, %73 : vector<2x8x1xf32>
    %76 = arith.mulf %72, %75 : vector<2x8x1xf32>
    "tpu.trace_start"() <{level = 10 : i32, message = "bqk,bkd->bqd"}> : () -> ()
    %cst_22 = arith.constant dense<0.000000e+00> : vector<2x8x8xf32>
    %77 = tpu.matmul %69, %63, %cst_22 {dimension_numbers = #tpu.dot_dimension_numbers<[2], [1], [1], [2], [0, 0, 0, 1, 1, 2], [0], [0]>} : vector<2x8x8xf32>, vector<2x8x8xf32>, vector<2x8x8xf32> -> vector<2x8x8xf32>
    "tpu.trace_stop"() : () -> ()
    %78 = vector.broadcast %76 : vector<2x8x1xf32> to vector<2x8x8xf32>
    %79 = arith.mulf %77, %78 : vector<2x8x8xf32>
    %80 = tpu.concatenate %22, %41, %60, %79 in 2 : vector<2x8x8xf32>, vector<2x8x8xf32>, vector<2x8x8xf32>, vector<2x8x8xf32> -> vector<2x8x32xf32>
    %81 = vector.shape_cast %80 : vector<2x8x32xf32> to vector<16x32xf32>
    %c0_23 = arith.constant 0 : index
    %c0_24 = arith.constant 0 : index
    %82 = vector.load %arg3[%c0_23, %c0_24] : memref<32x32xf32, #tpu.memory_space<vmem>>, vector<32x32xf32>
    %cst_25 = arith.constant dense<0.000000e+00> : vector<16x32xf32>
    %83 = tpu.matmul %81, %82, %cst_25 {dimension_numbers = #tpu.dot_dimension_numbers<[1], [0], [0], [1], [0, 0, 1, 1], [], []>} : vector<16x32xf32>, vector<32x32xf32>, vector<16x32xf32> -> vector<16x32xf32>
    %c0_26 = arith.constant 0 : index
    %c0_27 = arith.constant 0 : index
    %84 = vector.load %arg4[%c0_26, %c0_27] : memref<16x32xf32, #tpu.memory_space<vmem>>, vector<16x32xf32>
    tpu.vector_store %arg4[%c0_26, %c0_27], %83 {strides = array<i32>} : memref<16x32xf32, #tpu.memory_space<vmem>>, vector<16x32xf32>,
    return
  }
  func.func @transform_0(%arg0: i32) -> (i32, i32) {
    %c0_i32 = arith.constant 0 : i32
    %c0_i32_0 = arith.constant 0 : i32
    return %arg0, %c0_i32 : i32, i32
  }
  func.func @transform_1(%arg0: i32) -> (i32, i32) {
    %c0_i32 = arith.constant 0 : i32
    %c0_i32_0 = arith.constant 0 : i32
    %c0_i32_1 = arith.constant 0 : i32
    return %c0_i32, %c0_i32_0 : i32, i32
  }
  func.func @transform_2(%arg0: i32) -> (i32, i32) {
    %c0_i32 = arith.constant 0 : i32
    %c0_i32_0 = arith.constant 0 : i32
    %c0_i32_1 = arith.constant 0 : i32
    return %c0_i32, %c0_i32_0 : i32, i32
  }
  func.func @transform_3(%arg0: i32) -> (i32, i32) {
    %c0_i32 = arith.constant 0 : i32
    %c0_i32_0 = arith.constant 0 : i32
    return %arg0, %c0_i32 : i32, i32
  }
}

</mosaic_0001>

<llo_original>
// kernel: tpu_custom_call.1
$region0: #{tpu_custom_call.1}
  #allocation0 [shape = 'u32[]', space=smem, size = 0x4, offset = 0x4, fixed_abs, tag = 'smem constant byte address 0x4 - core index']
  #allocation1 [shape = 'u32[144,128]{1,0:T(1,128)}', space=vmem, size = 0x12000, scoped, tag = 'internal scratch']
  %s0 = inlined_call_operand.hbm [shape: f32[16,32], index: 0, kind: input, shape index: {}]
  %s1 = inlined_call_operand.hbm [shape: f32[32,96], index: 1, kind: input, shape index: {}]
  %s2 = inlined_call_operand.hbm [shape: f32[32,32], index: 2, kind: input, shape index: {}]
  %s3 = inlined_call_operand.hbm [shape: f32[16,32], index: 3, kind: output, shape index: {}]
  %s4 = sld [smem:[#allocation0]]
  $region34: #{tpu_custom_call.1} parent=0
    _
  %s6 = ssub.s32 1, %s4
  %s7 = scalar_select 0, %s6, %s4
  $region1: #{tpu_custom_call.1} parent=0
    #allocation2 [shape = 'u8[8192]{0}', space=vmem, size = 0x2000, scoped, tag = 'input window, operand 0, single buffered']
    #allocation3 [shape = 's32[1]{0}', space=sflag, size = 0x4, scoped, tag = 'scoped memory for tpu_custom_call.1']
    #allocation4 [shape = 's32[1]{0}', space=sflag, size = 0x4, scoped, tag = 'scoped memory for tpu_custom_call.1']
    #allocation5 [shape = 'u8[16384]{0}', space=vmem, size = 0x4000, scoped, tag = 'input window, operand 1, single buffered']
    #allocation6 [shape = 's32[1]{0}', space=sflag, size = 0x4, scoped, tag = 'scoped memory for tpu_custom_call.1']
    #allocation7 [shape = 'u8[16384]{0}', space=vmem, size = 0x4000, scoped, tag = 'input window, operand 2, single buffered']
    #allocation8 [shape = 'u8[8192]{0}', space=vmem, size = 0x2000, scoped, tag = 'output window, operand 0, single buffered']
    %8 = vsyncpa [#allocation3], 0
    %9 = vsyncpa [#allocation6], 0
    %10 = vsyncpa [#allocation4], 0
    // Predicated region
    $region2: #{tpu_custom_call.1} parent=1 // pred_check
      _
    $region3: #{tpu_custom_call.1} parent=1 // pred_check_branch
      %12 = sbr.rel (0) target = $region5
    $region4: #{tpu_custom_call.1} parent=1 // pred_region
      %s14 = ssub.s32 256, 256
      %15 = vsyncadd [#allocation3], %s14
      %s16 = sshll.u32 [#allocation2], 4
      %s17 = int_to_ptr.vmem [resolvable:$true] %s16
      %22 = dma.hbm_to_vmem [thread:$0]  %s0, 256, %s17, [#allocation3], 128, 128, 8
    $region5: #{tpu_custom_call.1} parent=1 // pred_fallthru
      _
    // Predicated region
    $region6: #{tpu_custom_call.1} parent=1 // pred_check
      _
    $region7: #{tpu_custom_call.1} parent=1 // pred_check_branch
      %24 = sbr.rel (0) target = $region9
    $region8: #{tpu_custom_call.1} parent=1 // pred_region
      %s26 = ssub.s32 512, 512
      %27 = vsyncadd [#allocation6], %s26
      %s28 = sshll.u32 [#allocation5], 4
      %s29 = int_to_ptr.vmem [resolvable:$true] %s28
      %34 = dma.hbm_to_vmem [thread:$0]  %s1, 512, %s29, [#allocation6], 128, 128, 8
    $region9: #{tpu_custom_call.1} parent=1 // pred_fallthru
      _
    // Predicated region
    $region10: #{tpu_custom_call.1} parent=1 // pred_check
      _
    $region11: #{tpu_custom_call.1} parent=1 // pred_check_branch
      %36 = sbr.rel (0) target = $region13
    $region12: #{tpu_custom_call.1} parent=1 // pred_region
      %s38 = ssub.s32 512, 512
      %39 = vsyncadd [#allocation6], %s38
      %s40 = sshll.u32 [#allocation7], 4
      %s41 = int_to_ptr.vmem [resolvable:$true] %s40
      %46 = dma.hbm_to_vmem [thread:$0]  %s2, 512, %s41, [#allocation6], 128, 128, 8
    $region13: #{tpu_custom_call.1} parent=1 // pred_fallthru
      _
    // Predicated region
    $region14: #{tpu_custom_call.1} parent=1 // pred_check
      _
    $region15: #{tpu_custom_call.1} parent=1 // pred_check_branch
      %48 = sbr.rel (0) target = $region17
    $region16: #{tpu_custom_call.1} parent=1 // pred_region
      %49 = dma.done [#allocation3], 256
    $region17: #{tpu_custom_call.1} parent=1 // pred_fallthru
      _
    // Predicated region
    $region18: #{tpu_custom_call.1} parent=1 // pred_check
      _
    $region19: #{tpu_custom_call.1} parent=1 // pred_check_branch
      %51 = sbr.rel (0) target = $region21
    $region20: #{tpu_custom_call.1} parent=1 // pred_region
      %52 = dma.done [#allocation6], 512
    $region21: #{tpu_custom_call.1} parent=1 // pred_fallthru
      _
    // Predicated region
    $region22: #{tpu_custom_call.1} parent=1 // pred_check
      _
    $region23: #{tpu_custom_call.1} parent=1 // pred_check_branch
      %54 = sbr.rel (0) target = $region25
    $region24: #{tpu_custom_call.1} parent=1 // pred_region
      %55 = dma.done [#allocation6], 512
    $region25: #{tpu_custom_call.1} parent=1 // pred_fallthru
      _
    %v56 = vld [vmem:[#allocation2] sm:$0xff]
    %v57 = vld [vmem:[#allocation2 + $0x8] sm:$0xff]
    %v58 = vld [vmem:[#allocation5] sm:$0xff]
    %v59 = vld [vmem:[#allocation5 + $0x8] sm:$0xff]
    %v60 = vld [vmem:[#allocation5 + $0x10] sm:$0xff]
    %v61 = vld [vmem:[#allocation5 + $0x18] sm:$0xff]
    %vm62 = vcmask 261120
    %v64 = vsel %vm62, %v56, 0
    %v67 = vsel %vm62, %v57, 0
    %69 = vmatprep.subr.mxu0 0.0
    %70 = vmatpush1.msra.mxu0 0.0
    %71 = vmatprep.subr.mxu0 0.0
    %72 = vmatpush1.msra.mxu0 0.0
    %73 = vmatprep.subr.mxu0 0.0
    %74 = vmatpush1.msra.mxu0 0.0
    %75 = vmatprep.subr.mxu0 0.0
    %76 = vmatpush1.msra.mxu0 0.0
    %77 = vmatprep.subr.mxu0 0.0
    %78 = vmatpush1.msra.mxu0 0.0
    %79 = vmatprep.subr.mxu0 0.0
    %80 = vmatpush1.msra.mxu0 0.0
    %81 = vmatprep.subr.mxu0 0.0
    %82 = vmatpush1.msra.mxu0 0.0
    %83 = vmatprep.subr.mxu0 0.0
    %84 = vmatpush1.msra.mxu0 0.0
    %85 = vmatprep.subr.mxu0 0.0
    %86 = vmatpush1.msra.mxu0 0.0
    %87 = vmatprep.subr.mxu0 0.0
    %88 = vmatpush1.msra.mxu0 0.0
    %89 = vmatprep.subr.mxu0 0.0
    %90 = vmatpush1.msra.mxu0 0.0
    %91 = vmatprep.subr.mxu0 0.0
    %92 = vmatpush1.msra.mxu0 0.0
    %93 = vmatprep.subr.mxu0 0.0
    %94 = vmatpush1.msra.mxu0 %v61
    %95 = vmatprep.subr.mxu0 0.0
    %96 = vmatpush1.msra.mxu0 %v60
    %97 = vmatprep.subr.mxu0 0.0
    %98 = vmatpush1.msra.mxu0 %v59
    %99 = vmatprep.subr.mxu0 0.0
    %100 = vmatpush1.msra.mxu0 %v58
    %101 = vmatprep.subr.mxu0 0.0
    %102 = vmatpush2.msra.mxu0 0.0
    %103 = vmatprep.subr.mxu0 0.0
    %104 = vmatpush2.msra.mxu0 0.0
    %105 = vmatprep.subr.mxu0 0.0
    %106 = vmatpush2.msra.mxu0 0.0
    %107 = vmatprep.subr.mxu0 0.0
    %108 = vmatpush2.msra.mxu0 0.0
    %109 = vmatprep.subr.mxu0 0.0
    %110 = vmatpush2.msra.mxu0 0.0
    %111 = vmatprep.subr.mxu0 0.0
    %112 = vmatpush2.msra.mxu0 0.0
    %113 = vmatprep.subr.mxu0 0.0
    %114 = vmatpush2.msra.mxu0 0.0
    %115 = vmatprep.subr.mxu0 0.0
    %116 = vmatpush2.msra.mxu0 0.0
    %117 = vmatprep.subr.mxu0 0.0
    %118 = vmatpush2.msra.mxu0 0.0
    %119 = vmatprep.subr.mxu0 0.0
    %120 = vmatpush2.msra.mxu0 0.0
    %121 = vmatprep.subr.mxu0 0.0
    %122 = vmatpush2.msra.mxu0 0.0
    %123 = vmatprep.subr.mxu0 0.0
    %124 = vmatpush2.msra.mxu0 0.0
    %125 = vmatprep.subr.mxu0 0.0
    %126 = vmatpush2.msra.mxu0 0.0
    %127 = vmatprep.subr.mxu0 0.0
    %128 = vmatpush2.msra.mxu0 0.0
    %129 = vmatprep.subr.mxu0 0.0
    %130 = vmatpush2.msra.mxu0 0.0
    %131 = vmatprep.subr.mxu0 0.0
    %132 = vmatpush2.msra.mxu0 0.0
    %133 = vmatprep.mubr.f32.mxu0 0.0
    %134 = vmatmul.mubr.f32.gmra.mxu0 %v64
    %v135 = vpop.f32.mrf.mxu0
    %v136 = vadd.f32 0.0, %v135
    %v137 = vpop.f32.mrf.mxu0
    %138 = vmatprep.mubr.f32.mxu0 0.0
    %139 = vmatmul.mubr.f32.gmra.mxu0 %v67
    %v140 = vpop.f32.mrf.mxu0
    %v141 = vadd.f32 0.0, %v140
    %v142 = vpop.f32.mrf.mxu0
    %143 = vdwg.mxu0
    %145 = vrot.lane.b32.xlu0 %v136, 96
    %v146 = vpop.permute.xlu0 %145
    %vm147 = vcmask 64512
    %v148 = vsel %vm147, %v136, 0
    %v150 = vsel %vm147, %v146, 0
    %152 = vmatprep.subr.mxu0 0.0
    %153 = vmatpush1.xpose.msra.mxu0 0.0
    %154 = vmatprep.subr.mxu0 0.0
    %155 = vmatpush1.xpose.msra.mxu0 0.0
    %156 = vmatprep.subr.mxu0 0.0
    %157 = vmatpush1.xpose.msra.mxu0 0.0
    %158 = vmatprep.subr.mxu0 0.0
    %159 = vmatpush1.xpose.msra.mxu0 0.0
    %160 = vmatprep.subr.mxu0 0.0
    %161 = vmatpush1.xpose.msra.mxu0 0.0
    %162 = vmatprep.subr.mxu0 0.0
    %163 = vmatpush1.xpose.msra.mxu0 0.0
    %164 = vmatprep.subr.mxu0 0.0
    %165 = vmatpush1.xpose.msra.mxu0 0.0
    %166 = vmatprep.subr.mxu0 0.0
    %167 = vmatpush1.xpose.msra.mxu0 0.0
    %168 = vmatprep.subr.mxu0 0.0
    %169 = vmatpush1.xpose.msra.mxu0 0.0
    %170 = vmatprep.subr.mxu0 0.0
    %171 = vmatpush1.xpose.msra.mxu0 0.0
    %172 = vmatprep.subr.mxu0 0.0
    %173 = vmatpush1.xpose.msra.mxu0 0.0
    %174 = vmatprep.subr.mxu0 0.0
    %175 = vmatpush1.xpose.msra.mxu0 0.0
    %176 = vmatprep.subr.mxu0 0.0
    %177 = vmatpush1.xpose.msra.mxu0 0.0
    %178 = vmatprep.subr.mxu0 0.0
    %179 = vmatpush1.xpose.msra.mxu0 0.0
    %180 = vmatprep.subr.mxu0 0.0
    %181 = vmatpush1.xpose.msra.mxu0 0.0
    %182 = vmatprep.subr.mxu0 0.0
    %183 = vmatpush1.xpose.msra.mxu0 %v150
    %184 = vmatprep.subr.mxu0 0.0
    %185 = vmatpush2.xpose.msra.mxu0 0.0
    %186 = vmatprep.subr.mxu0 0.0
    %187 = vmatpush2.xpose.msra.mxu0 0.0
    %188 = vmatprep.subr.mxu0 0.0
    %189 = vmatpush2.xpose.msra.mxu0 0.0
    %190 = vmatprep.subr.mxu0 0.0
    %191 = vmatpush2.xpose.msra.mxu0 0.0
    %192 = vmatprep.subr.mxu0 0.0
    %193 = vmatpush2.xpose.msra.mxu0 0.0
    %194 = vmatprep.subr.mxu0 0.0
    %195 = vmatpush2.xpose.msra.mxu0 0.0
    %196 = vmatprep.subr.mxu0 0.0
    %197 = vmatpush2.xpose.msra.mxu0 0.0
    %198 = vmatprep.subr.mxu0 0.0
    %199 = vmatpush2.xpose.msra.mxu0 0.0
    %200 = vmatprep.subr.mxu0 0.0
    %201 = vmatpush2.xpose.msra.mxu0 0.0
    %202 = vmatprep.subr.mxu0 0.0
    %203 = vmatpush2.xpose.msra.mxu0 0.0
    %204 = vmatprep.subr.mxu0 0.0
    %205 = vmatpush2.xpose.msra.mxu0 0.0
    %206 = vmatprep.subr.mxu0 0.0
    %207 = vmatpush2.xpose.msra.mxu0 0.0
    %208 = vmatprep.subr.mxu0 0.0
    %209 = vmatpush2.xpose.msra.mxu0 0.0
    %210 = vmatprep.subr.mxu0 0.0
    %211 = vmatpush2.xpose.msra.mxu0 0.0
    %212 = vmatprep.subr.mxu0 0.0
    %213 = vmatpush2.xpose.msra.mxu0 0.0
    %214 = vmatprep.subr.mxu0 0.0
    %215 = vmatpush2.xpose.msra.mxu0 0.0
    %216 = vmatprep.mubr.f32.mxu0 0.0
    %217 = vmatmul.mubr.f32.gmra.mxu0 %v148
    %v218 = vpop.f32.mrf.mxu0
    %v219 = vadd.f32 0.0, %v218
    %v220 = vpop.f32.mrf.mxu0
    %221 = vdwg.mxu0
    %223 = vrot.lane.b32.xlu0 %v141, 96
    %v224 = vpop.permute.xlu0 %223
    %v225 = vsel %vm147, %v141, 0
    %v227 = vsel %vm147, %v224, 0
    %229 = vmatprep.subr.mxu0 0.0
    %230 = vmatpush1.xpose.msra.mxu0 0.0
    %231 = vmatprep.subr.mxu0 0.0
    %232 = vmatpush1.xpose.msra.mxu0 0.0
    %233 = vmatprep.subr.mxu0 0.0
    %234 = vmatpush1.xpose.msra.mxu0 0.0
    %235 = vmatprep.subr.mxu0 0.0
    %236 = vmatpush1.xpose.msra.mxu0 0.0
    %237 = vmatprep.subr.mxu0 0.0
    %238 = vmatpush1.xpose.msra.mxu0 0.0
    %239 = vmatprep.subr.mxu0 0.0
    %240 = vmatpush1.xpose.msra.mxu0 0.0
    %241 = vmatprep.subr.mxu0 0.0
    %242 = vmatpush1.xpose.msra.mxu0 0.0
    %243 = vmatprep.subr.mxu0 0.0
    %244 = vmatpush1.xpose.msra.mxu0 0.0
    %245 = vmatprep.subr.mxu0 0.0
    %246 = vmatpush1.xpose.msra.mxu0 0.0
    %247 = vmatprep.subr.mxu0 0.0
    %248 = vmatpush1.xpose.msra.mxu0 0.0
    %249 = vmatprep.subr.mxu0 0.0
    %250 = vmatpush1.xpose.msra.mxu0 0.0
    %251 = vmatprep.subr.mxu0 0.0
    %252 = vmatpush1.xpose.msra.mxu0 0.0
    %253 = vmatprep.subr.mxu0 0.0
    %254 = vmatpush1.xpose.msra.mxu0 0.0
    %255 = vmatprep.subr.mxu0 0.0
    %256 = vmatpush1.xpose.msra.mxu0 0.0
    %257 = vmatprep.subr.mxu0 0.0
    %258 = vmatpush1.xpose.msra.mxu0 0.0
    %259 = vmatprep.subr.mxu0 0.0
    %260 = vmatpush1.xpose.msra.mxu0 %v227
    %261 = vmatprep.subr.mxu0 0.0
    %262 = vmatpush2.xpose.msra.mxu0 0.0
    %263 = vmatprep.subr.mxu0 0.0
    %264 = vmatpush2.xpose.msra.mxu0 0.0
    %265 = vmatprep.subr.mxu0 0.0
    %266 = vmatpush2.xpose.msra.mxu0 0.0
    %267 = vmatprep.subr.mxu0 0.0
    %268 = vmatpush2.xpose.msra.mxu0 0.0
    %269 = vmatprep.subr.mxu0 0.0
    %270 = vmatpush2.xpose.msra.mxu0 0.0
    %271 = vmatprep.subr.mxu0 0.0
    %272 = vmatpush2.xpose.msra.mxu0 0.0
    %273 = vmatprep.subr.mxu0 0.0
    %274 = vmatpush2.xpose.msra.mxu0 0.0
    %275 = vmatprep.subr.mxu0 0.0
    %276 = vmatpush2.xpose.msra.mxu0 0.0
    %277 = vmatprep.subr.mxu0 0.0
    %278 = vmatpush2.xpose.msra.mxu0 0.0
    %279 = vmatprep.subr.mxu0 0.0
    %280 = vmatpush2.xpose.msra.mxu0 0.0
    %281 = vmatprep.subr.mxu0 0.0
    %282 = vmatpush2.xpose.msra.mxu0 0.0
    %283 = vmatprep.subr.mxu0 0.0
    %284 = vmatpush2.xpose.msra.mxu0 0.0
    %285 = vmatprep.subr.mxu0 0.0
    %286 = vmatpush2.xpose.msra.mxu0 0.0
    %287 = vmatprep.subr.mxu0 0.0
    %288 = vmatpush2.xpose.msra.mxu0 0.0
    %289 = vmatprep.subr.mxu0 0.0
    %290 = vmatpush2.xpose.msra.mxu0 0.0
    %291 = vmatprep.subr.mxu0 0.0
    %292 = vmatpush2.xpose.msra.mxu0 0.0
    %293 = vmatprep.mubr.f32.mxu0 0.0
    %294 = vmatmul.mubr.f32.gmra.mxu0 %v225
    %v295 = vpop.f32.mrf.mxu0
    %v296 = vadd.f32 0.0, %v295
    %v297 = vpop.f32.mrf.mxu0
    %298 = vdwg.mxu0
    %v299 = vsel %vm147, %v219, -inf
    %300 = vmax.xlane.f32.xlu0 %v299
    %v301 = vpop.xlane.xlu0 %300
    %v302 = vsel %vm147, %v296, -inf
    %303 = vmax.xlane.f32.xlu0 %v302
    %v304 = vpop.xlane.xlu0 %303
    %v305 = vsub.f32 %v219, %v301
    %v306 = vsub.f32 %v296, %v304
    %v307 = vmul.f32 %v305, 1.442695
    %v308 = vpow.pop %v307
    %v309 = vmul.f32 %v306, 1.442695
    %v310 = vpow.pop %v309
    %v311 = vsel %vm147, %v308, 0.0
    %312 = vadd.xlane.f32.xlu0 %v311
    %v313 = vpop.xlane.xlu0 %312
    %v314 = vsel %vm147, %v310, 0.0
    %315 = vadd.xlane.f32.xlu0 %v314
    %v316 = vpop.xlane.xlu0 %315
    %v317 = vrcp.pop %v313
    %v318 = vrcp.pop %v316
    %v319 = vmul.f32 %v313, %v317
    %v320 = vmul.f32 %v316, %v318
    %v321 = vsub.f32 2.0, %v319
    %v322 = vsub.f32 2.0, %v320
    %v323 = vmul.f32 %v317, %v321
    %v324 = vmul.f32 %v318, %v322
    %325 = vrot.lane.b32.xlu0 %v136, 64
    %v326 = vpop.permute.xlu0 %325
    %v329 = vsel %vm147, %v308, 0
    %331 = vmatprep.subr.mxu0 0.0
    %332 = vmatpush1.msra.mxu0 0.0
    %333 = vmatprep.subr.mxu0 0.0
    %334 = vmatpush1.msra.mxu0 0.0
    %335 = vmatprep.subr.mxu0 0.0
    %336 = vmatpush1.msra.mxu0 0.0
    %337 = vmatprep.subr.mxu0 0.0
    %338 = vmatpush1.msra.mxu0 0.0
    %339 = vmatprep.subr.mxu0 0.0
    %340 = vmatpush1.msra.mxu0 0.0
    %341 = vmatprep.subr.mxu0 0.0
    %342 = vmatpush1.msra.mxu0 0.0
    %343 = vmatprep.subr.mxu0 0.0
    %344 = vmatpush1.msra.mxu0 0.0
    %345 = vmatprep.subr.mxu0 0.0
    %346 = vmatpush1.msra.mxu0 0.0
    %347 = vmatprep.subr.mxu0 0.0
    %348 = vmatpush1.msra.mxu0 0.0
    %349 = vmatprep.subr.mxu0 0.0
    %350 = vmatpush1.msra.mxu0 0.0
    %351 = vmatprep.subr.mxu0 0.0
    %352 = vmatpush1.msra.mxu0 0.0
    %353 = vmatprep.subr.mxu0 0.0
    %354 = vmatpush1.msra.mxu0 0.0
    %355 = vmatprep.subr.mxu0 0.0
    %356 = vmatpush1.msra.mxu0 0.0
    %357 = vmatprep.subr.mxu0 0.0
    %358 = vmatpush1.msra.mxu0 0.0
    %359 = vmatprep.subr.mxu0 0.0
    %360 = vmatpush1.msra.mxu0 0.0
    %361 = vmatprep.subr.mxu0 0.0
    %362 = vmatpush1.msra.mxu0 %v326
    %363 = vmatprep.subr.mxu0 0.0
    %364 = vmatpush2.msra.mxu0 0.0
    %365 = vmatprep.subr.mxu0 0.0
    %366 = vmatpush2.msra.mxu0 0.0
    %367 = vmatprep.subr.mxu0 0.0
    %368 = vmatpush2.msra.mxu0 0.0
    %369 = vmatprep.subr.mxu0 0.0
    %370 = vmatpush2.msra.mxu0 0.0
    %371 = vmatprep.subr.mxu0 0.0
    %372 = vmatpush2.msra.mxu0 0.0
    %373 = vmatprep.subr.mxu0 0.0
    %374 = vmatpush2.msra.mxu0 0.0
    %375 = vmatprep.subr.mxu0 0.0
    %376 = vmatpush2.msra.mxu0 0.0
    %377 = vmatprep.subr.mxu0 0.0
    %378 = vmatpush2.msra.mxu0 0.0
    %379 = vmatprep.subr.mxu0 0.0
    %380 = vmatpush2.msra.mxu0 0.0
    %381 = vmatprep.subr.mxu0 0.0
    %382 = vmatpush2.msra.mxu0 0.0
    %383 = vmatprep.subr.mxu0 0.0
    %384 = vmatpush2.msra.mxu0 0.0
    %385 = vmatprep.subr.mxu0 0.0
    %386 = vmatpush2.msra.mxu0 0.0
    %387 = vmatprep.subr.mxu0 0.0
    %388 = vmatpush2.msra.mxu0 0.0
    %389 = vmatprep.subr.mxu0 0.0
    %390 = vmatpush2.msra.mxu0 0.0
    %391 = vmatprep.subr.mxu0 0.0
    %392 = vmatpush2.msra.mxu0 0.0
    %393 = vmatprep.subr.mxu0 0.0
    %394 = vmatpush2.msra.mxu0 0.0
    %395 = vmatprep.mubr.f32.mxu0 0.0
    %396 = vmatmul.mubr.f32.gmra.mxu0 %v329
    %v397 = vpop.f32.mrf.mxu0
    %v398 = vadd.f32 0.0, %v397
    %v399 = vpop.f32.mrf.mxu0
    %400 = vdwg.mxu0
    %401 = vrot.lane.b32.xlu0 %v141, 64
    %v402 = vpop.permute.xlu0 %401
    %v405 = vsel %vm147, %v310, 0
    %407 = vmatprep.subr.mxu0 0.0
    %408 = vmatpush1.msra.mxu0 0.0
    %409 = vmatprep.subr.mxu0 0.0
    %410 = vmatpush1.msra.mxu0 0.0
    %411 = vmatprep.subr.mxu0 0.0
    %412 = vmatpush1.msra.mxu0 0.0
    %413 = vmatprep.subr.mxu0 0.0
    %414 = vmatpush1.msra.mxu0 0.0
    %415 = vmatprep.subr.mxu0 0.0
    %416 = vmatpush1.msra.mxu0 0.0
    %417 = vmatprep.subr.mxu0 0.0
    %418 = vmatpush1.msra.mxu0 0.0
    %419 = vmatprep.subr.mxu0 0.0
    %420 = vmatpush1.msra.mxu0 0.0
    %421 = vmatprep.subr.mxu0 0.0
    %422 = vmatpush1.msra.mxu0 0.0
    %423 = vmatprep.subr.mxu0 0.0
    %424 = vmatpush1.msra.mxu0 0.0
    %425 = vmatprep.subr.mxu0 0.0
    %426 = vmatpush1.msra.mxu0 0.0
    %427 = vmatprep.subr.mxu0 0.0
    %428 = vmatpush1.msra.mxu0 0.0
    %429 = vmatprep.subr.mxu0 0.0
    %430 = vmatpush1.msra.mxu0 0.0
    %431 = vmatprep.subr.mxu0 0.0
    %432 = vmatpush1.msra.mxu0 0.0
    %433 = vmatprep.subr.mxu0 0.0
    %434 = vmatpush1.msra.mxu0 0.0
    %435 = vmatprep.subr.mxu0 0.0
    %436 = vmatpush1.msra.mxu0 0.0
    %437 = vmatprep.subr.mxu0 0.0
    %438 = vmatpush1.msra.mxu0 %v402
    %439 = vmatprep.subr.mxu0 0.0
    %440 = vmatpush2.msra.mxu0 0.0
    %441 = vmatprep.subr.mxu0 0.0
    %442 = vmatpush2.msra.mxu0 0.0
    %443 = vmatprep.subr.mxu0 0.0
    %444 = vmatpush2.msra.mxu0 0.0
    %445 = vmatprep.subr.mxu0 0.0
    %446 = vmatpush2.msra.mxu0 0.0
    %447 = vmatprep.subr.mxu0 0.0
    %448 = vmatpush2.msra.mxu0 0.0
    %449 = vmatprep.subr.mxu0 0.0
    %450 = vmatpush2.msra.mxu0 0.0
    %451 = vmatprep.subr.mxu0 0.0
    %452 = vmatpush2.msra.mxu0 0.0
    %453 = vmatprep.subr.mxu0 0.0
    %454 = vmatpush2.msra.mxu0 0.0
    %455 = vmatprep.subr.mxu0 0.0
    %456 = vmatpush2.msra.mxu0 0.0
    %457 = vmatprep.subr.mxu0 0.0
    %458 = vmatpush2.msra.mxu0 0.0
    %459 = vmatprep.subr.mxu0 0.0
    %460 = vmatpush2.msra.mxu0 0.0
    %461 = vmatprep.subr.mxu0 0.0
    %462 = vmatpush2.msra.mxu0 0.0
    %463 = vmatprep.subr.mxu0 0.0
    %464 = vmatpush2.msra.mxu0 0.0
    %465 = vmatprep.subr.mxu0 0.0
    %466 = vmatpush2.msra.mxu0 0.0
    %467 = vmatprep.subr.mxu0 0.0
    %468 = vmatpush2.msra.mxu0 0.0
    %469 = vmatprep.subr.mxu0 0.0
    %470 = vmatpush2.msra.mxu0 0.0
    %471 = vmatprep.mubr.f32.mxu0 0.0
    %472 = vmatmul.mubr.f32.gmra.mxu0 %v405
    %v473 = vpop.f32.mrf.mxu0
    %v474 = vadd.f32 0.0, %v473
    %v475 = vpop.f32.mrf.mxu0
    %476 = vdwg.mxu0
    %v477 = vmul.f32 %v398, %v323
    %v478 = vmul.f32 %v474, %v324
    %479 = vrot.lane.b32.xlu0 %v136, 120
    %v480 = vpop.permute.xlu0 %479
    %481 = vrot.lane.b32.xlu0 %v136, 88
    %v482 = vpop.permute.xlu0 %481
    %v483 = vsel %vm147, %v480, 0
    %v485 = vsel %vm147, %v482, 0
    %487 = vmatprep.subr.mxu0 0.0
    %488 = vmatpush1.xpose.msra.mxu0 0.0
    %489 = vmatprep.subr.mxu0 0.0
    %490 = vmatpush1.xpose.msra.mxu0 0.0
    %491 = vmatprep.subr.mxu0 0.0
    %492 = vmatpush1.xpose.msra.mxu0 0.0
    %493 = vmatprep.subr.mxu0 0.0
    %494 = vmatpush1.xpose.msra.mxu0 0.0
    %495 = vmatprep.subr.mxu0 0.0
    %496 = vmatpush1.xpose.msra.mxu0 0.0
    %497 = vmatprep.subr.mxu0 0.0
    %498 = vmatpush1.xpose.msra.mxu0 0.0
    %499 = vmatprep.subr.mxu0 0.0
    %500 = vmatpush1.xpose.msra.mxu0 0.0
    %501 = vmatprep.subr.mxu0 0.0
    %502 = vmatpush1.xpose.msra.mxu0 0.0
    %503 = vmatprep.subr.mxu0 0.0
    %504 = vmatpush1.xpose.msra.mxu0 0.0
    %505 = vmatprep.subr.mxu0 0.0
    %506 = vmatpush1.xpose.msra.mxu0 0.0
    %507 = vmatprep.subr.mxu0 0.0
    %508 = vmatpush1.xpose.msra.mxu0 0.0
    %509 = vmatprep.subr.mxu0 0.0
    %510 = vmatpush1.xpose.msra.mxu0 0.0
    %511 = vmatprep.subr.mxu0 0.0
    %512 = vmatpush1.xpose.msra.mxu0 0.0
    %513 = vmatprep.subr.mxu0 0.0
    %514 = vmatpush1.xpose.msra.mxu0 0.0
    %515 = vmatprep.subr.mxu0 0.0
    %516 = vmatpush1.xpose.msra.mxu0 0.0
    %517 = vmatprep.subr.mxu0 0.0
    %518 = vmatpush1.xpose.msra.mxu0 %v485
    %519 = vmatprep.subr.mxu0 0.0
    %520 = vmatpush2.xpose.msra.mxu0 0.0
    %521 = vmatprep.subr.mxu0 0.0
    %522 = vmatpush2.xpose.msra.mxu0 0.0
    %523 = vmatprep.subr.mxu0 0.0
    %524 = vmatpush2.xpose.msra.mxu0 0.0
    %525 = vmatprep.subr.mxu0 0.0
    %526 = vmatpush2.xpose.msra.mxu0 0.0
    %527 = vmatprep.subr.mxu0 0.0
    %528 = vmatpush2.xpose.msra.mxu0 0.0
    %529 = vmatprep.subr.mxu0 0.0
    %530 = vmatpush2.xpose.msra.mxu0 0.0
    %531 = vmatprep.subr.mxu0 0.0
    %532 = vmatpush2.xpose.msra.mxu0 0.0
    %533 = vmatprep.subr.mxu0 0.0
    %534 = vmatpush2.xpose.msra.mxu0 0.0
    %535 = vmatprep.subr.mxu0 0.0
    %536 = vmatpush2.xpose.msra.mxu0 0.0
    %537 = vmatprep.subr.mxu0 0.0
    %538 = vmatpush2.xpose.msra.mxu0 0.0
    %539 = vmatprep.subr.mxu0 0.0
    %540 = vmatpush2.xpose.msra.mxu0 0.0
    %541 = vmatprep.subr.mxu0 0.0
    %542 = vmatpush2.xpose.msra.mxu0 0.0
    %543 = vmatprep.subr.mxu0 0.0
    %544 = vmatpush2.xpose.msra.mxu0 0.0
    %545 = vmatprep.subr.mxu0 0.0
    %546 = vmatpush2.xpose.msra.mxu0 0.0
    %547 = vmatprep.subr.mxu0 0.0
    %548 = vmatpush2.xpose.msra.mxu0 0.0
    %549 = vmatprep.subr.mxu0 0.0
    %550 = vmatpush2.xpose.msra.mxu0 0.0
    %551 = vmatprep.mubr.f32.mxu0 0.0
    %552 = vmatmul.mubr.f32.gmra.mxu0 %v483
    %v553 = vpop.f32.mrf.mxu0
    %v554 = vadd.f32 0.0, %v553
    %v555 = vpop.f32.mrf.mxu0
    %556 = vdwg.mxu0
    %557 = vrot.lane.b32.xlu0 %v141, 120
    %v558 = vpop.permute.xlu0 %557
    %559 = vrot.lane.b32.xlu0 %v141, 88
    %v560 = vpop.permute.xlu0 %559
    %v561 = vsel %vm147, %v558, 0
    %v563 = vsel %vm147, %v560, 0
    %565 = vmatprep.subr.mxu0 0.0
    %566 = vmatpush1.xpose.msra.mxu0 0.0
    %567 = vmatprep.subr.mxu0 0.0
    %568 = vmatpush1.xpose.msra.mxu0 0.0
    %569 = vmatprep.subr.mxu0 0.0
    %570 = vmatpush1.xpose.msra.mxu0 0.0
    %571 = vmatprep.subr.mxu0 0.0
    %572 = vmatpush1.xpose.msra.mxu0 0.0
    %573 = vmatprep.subr.mxu0 0.0
    %574 = vmatpush1.xpose.msra.mxu0 0.0
    %575 = vmatprep.subr.mxu0 0.0
    %576 = vmatpush1.xpose.msra.mxu0 0.0
    %577 = vmatprep.subr.mxu0 0.0
    %578 = vmatpush1.xpose.msra.mxu0 0.0
    %579 = vmatprep.subr.mxu0 0.0
    %580 = vmatpush1.xpose.msra.mxu0 0.0
    %581 = vmatprep.subr.mxu0 0.0
    %582 = vmatpush1.xpose.msra.mxu0 0.0
    %583 = vmatprep.subr.mxu0 0.0
    %584 = vmatpush1.xpose.msra.mxu0 0.0
    %585 = vmatprep.subr.mxu0 0.0
    %586 = vmatpush1.xpose.msra.mxu0 0.0
    %587 = vmatprep.subr.mxu0 0.0
    %588 = vmatpush1.xpose.msra.mxu0 0.0
    %589 = vmatprep.subr.mxu0 0.0
    %590 = vmatpush1.xpose.msra.mxu0 0.0
    %591 = vmatprep.subr.mxu0 0.0
    %592 = vmatpush1.xpose.msra.mxu0 0.0
    %593 = vmatprep.subr.mxu0 0.0
    %594 = vmatpush1.xpose.msra.mxu0 0.0
    %595 = vmatprep.subr.mxu0 0.0
    %596 = vmatpush1.xpose.msra.mxu0 %v563
    %597 = vmatprep.subr.mxu0 0.0
    %598 = vmatpush2.xpose.msra.mxu0 0.0
    %599 = vmatprep.subr.mxu0 0.0
    %600 = vmatpush2.xpose.msra.mxu0 0.0
    %601 = vmatprep.subr.mxu0 0.0
    %602 = vmatpush2.xpose.msra.mxu0 0.0
    %603 = vmatprep.subr.mxu0 0.0
    %604 = vmatpush2.xpose.msra.mxu0 0.0
    %605 = vmatprep.subr.mxu0 0.0
    %606 = vmatpush2.xpose.msra.mxu0 0.0
    %607 = vmatprep.subr.mxu0 0.0
    %608 = vmatpush2.xpose.msra.mxu0 0.0
    %609 = vmatprep.subr.mxu0 0.0
    %610 = vmatpush2.xpose.msra.mxu0 0.0
    %611 = vmatprep.subr.mxu0 0.0
    %612 = vmatpush2.xpose.msra.mxu0 0.0
    %613 = vmatprep.subr.mxu0 0.0
    %614 = vmatpush2.xpose.msra.mxu0 0.0
    %615 = vmatprep.subr.mxu0 0.0
    %616 = vmatpush2.xpose.msra.mxu0 0.0
    %617 = vmatprep.subr.mxu0 0.0
    %618 = vmatpush2.xpose.msra.mxu0 0.0
    %619 = vmatprep.subr.mxu0 0.0
    %620 = vmatpush2.xpose.msra.mxu0 0.0
    %621 = vmatprep.subr.mxu0 0.0
    %622 = vmatpush2.xpose.msra.mxu0 0.0
    %623 = vmatprep.subr.mxu0 0.0
    %624 = vmatpush2.xpose.msra.mxu0 0.0
    %625 = vmatprep.subr.mxu0 0.0
    %626 = vmatpush2.xpose.msra.mxu0 0.0
    %627 = vmatprep.subr.mxu0 0.0
    %628 = vmatpush2.xpose.msra.mxu0 0.0
    %629 = vmatprep.mubr.f32.mxu0 0.0
    %630 = vmatmul.mubr.f32.gmra.mxu0 %v561
    %v631 = vpop.f32.mrf.mxu0
    %v632 = vadd.f32 0.0, %v631
    %v633 = vpop.f32.mrf.mxu0
    %634 = vdwg.mxu0
    %v635 = vsel %vm147, %v554, -inf
    %636 = vmax.xlane.f32.xlu0 %v635
    %v637 = vpop.xlane.xlu0 %636
    %v638 = vsel %vm147, %v632, -inf
    %639 = vmax.xlane.f32.xlu0 %v638
    %v640 = vpop.xlane.xlu0 %639
    %v641 = vsub.f32 %v554, %v637
    %v642 = vsub.f32 %v632, %v640
    %v643 = vmul.f32 %v641, 1.442695
    %v644 = vpow.pop %v643
    %v645 = vmul.f32 %v642, 1.442695
    %v646 = vpow.pop %v645
    %v647 = vsel %vm147, %v644, 0.0
    %648 = vadd.xlane.f32.xlu0 %v647
    %v649 = vpop.xlane.xlu0 %648
    %v650 = vsel %vm147, %v646, 0.0
    %651 = vadd.xlane.f32.xlu0 %v650
    %v652 = vpop.xlane.xlu0 %651
    %v653 = vrcp.pop %v649
    %v654 = vrcp.pop %v652
    %v655 = vmul.f32 %v649, %v653
    %v656 = vmul.f32 %v652, %v654
    %v657 = vsub.f32 2.0, %v655
    %v658 = vsub.f32 2.0, %v656
    %v659 = vmul.f32 %v653, %v657
    %v660 = vmul.f32 %v654, %v658
    %661 = vrot.lane.b32.xlu0 %v136, 56
    %v662 = vpop.permute.xlu0 %661
    %v665 = vsel %vm147, %v644, 0
    %667 = vmatprep.subr.mxu0 0.0
    %668 = vmatpush1.msra.mxu0 0.0
    %669 = vmatprep.subr.mxu0 0.0
    %670 = vmatpush1.msra.mxu0 0.0
    %671 = vmatprep.subr.mxu0 0.0
    %672 = vmatpush1.msra.mxu0 0.0
    %673 = vmatprep.subr.mxu0 0.0
    %674 = vmatpush1.msra.mxu0 0.0
    %675 = vmatprep.subr.mxu0 0.0
    %676 = vmatpush1.msra.mxu0 0.0
    %677 = vmatprep.subr.mxu0 0.0
    %678 = vmatpush1.msra.mxu0 0.0
    %679 = vmatprep.subr.mxu0 0.0
    %680 = vmatpush1.msra.mxu0 0.0
    %681 = vmatprep.subr.mxu0 0.0
    %682 = vmatpush1.msra.mxu0 0.0
    %683 = vmatprep.subr.mxu0 0.0
    %684 = vmatpush1.msra.mxu0 0.0
    %685 = vmatprep.subr.mxu0 0.0
    %686 = vmatpush1.msra.mxu0 0.0
    %687 = vmatprep.subr.mxu0 0.0
    %688 = vmatpush1.msra.mxu0 0.0
    %689 = vmatprep.subr.mxu0 0.0
    %690 = vmatpush1.msra.mxu0 0.0
    %691 = vmatprep.subr.mxu0 0.0
    %692 = vmatpush1.msra.mxu0 0.0
    %693 = vmatprep.subr.mxu0 0.0
    %694 = vmatpush1.msra.mxu0 0.0
    %695 = vmatprep.subr.mxu0 0.0
    %696 = vmatpush1.msra.mxu0 0.0
    %697 = vmatprep.subr.mxu0 0.0
    %698 = vmatpush1.msra.mxu0 %v662
    %699 = vmatprep.subr.mxu0 0.0
    %700 = vmatpush2.msra.mxu0 0.0
    %701 = vmatprep.subr.mxu0 0.0
    %702 = vmatpush2.msra.mxu0 0.0
    %703 = vmatprep.subr.mxu0 0.0
    %704 = vmatpush2.msra.mxu0 0.0
    %705 = vmatprep.subr.mxu0 0.0
    %706 = vmatpush2.msra.mxu0 0.0
    %707 = vmatprep.subr.mxu0 0.0
    %708 = vmatpush2.msra.mxu0 0.0
    %709 = vmatprep.subr.mxu0 0.0
    %710 = vmatpush2.msra.mxu0 0.0
    %711 = vmatprep.subr.mxu0 0.0
    %712 = vmatpush2.msra.mxu0 0.0
    %713 = vmatprep.subr.mxu0 0.0
    %714 = vmatpush2.msra.mxu0 0.0
    %715 = vmatprep.subr.mxu0 0.0
    %716 = vmatpush2.msra.mxu0 0.0
    %717 = vmatprep.subr.mxu0 0.0
    %718 = vmatpush2.msra.mxu0 0.0
    %719 = vmatprep.subr.mxu0 0.0
    %720 = vmatpush2.msra.mxu0 0.0
    %721 = vmatprep.subr.mxu0 0.0
    %722 = vmatpush2.msra.mxu0 0.0
    %723 = vmatprep.subr.mxu0 0.0
    %724 = vmatpush2.msra.mxu0 0.0
    %725 = vmatprep.subr.mxu0 0.0
    %726 = vmatpush2.msra.mxu0 0.0
    %727 = vmatprep.subr.mxu0 0.0
    %728 = vmatpush2.msra.mxu0 0.0
    %729 = vmatprep.subr.mxu0 0.0
    %730 = vmatpush2.msra.mxu0 0.0
    %731 = vmatprep.mubr.f32.mxu0 0.0
    %732 = vmatmul.mubr.f32.gmra.mxu0 %v665
    %v733 = vpop.f32.mrf.mxu0
    %v734 = vadd.f32 0.0, %v733
    %v735 = vpop.f32.mrf.mxu0
    %736 = vdwg.mxu0
    %737 = vrot.lane.b32.xlu0 %v141, 56
    %v738 = vpop.permute.xlu0 %737
    %v741 = vsel %vm147, %v646, 0
    %743 = vmatprep.subr.mxu0 0.0
    %744 = vmatpush1.msra.mxu0 0.0
    %745 = vmatprep.subr.mxu0 0.0
    %746 = vmatpush1.msra.mxu0 0.0
    %747 = vmatprep.subr.mxu0 0.0
    %748 = vmatpush1.msra.mxu0 0.0
    %749 = vmatprep.subr.mxu0 0.0
    %750 = vmatpush1.msra.mxu0 0.0
    %751 = vmatprep.subr.mxu0 0.0
    %752 = vmatpush1.msra.mxu0 0.0
    %753 = vmatprep.subr.mxu0 0.0
    %754 = vmatpush1.msra.mxu0 0.0
    %755 = vmatprep.subr.mxu0 0.0
    %756 = vmatpush1.msra.mxu0 0.0
    %757 = vmatprep.subr.mxu0 0.0
    %758 = vmatpush1.msra.mxu0 0.0
    %759 = vmatprep.subr.mxu0 0.0
    %760 = vmatpush1.msra.mxu0 0.0
    %761 = vmatprep.subr.mxu0 0.0
    %762 = vmatpush1.msra.mxu0 0.0
    %763 = vmatprep.subr.mxu0 0.0
    %764 = vmatpush1.msra.mxu0 0.0
    %765 = vmatprep.subr.mxu0 0.0
    %766 = vmatpush1.msra.mxu0 0.0
    %767 = vmatprep.subr.mxu0 0.0
    %768 = vmatpush1.msra.mxu0 0.0
    %769 = vmatprep.subr.mxu0 0.0
    %770 = vmatpush1.msra.mxu0 0.0
    %771 = vmatprep.subr.mxu0 0.0
    %772 = vmatpush1.msra.mxu0 0.0
    %773 = vmatprep.subr.mxu0 0.0
    %774 = vmatpush1.msra.mxu0 %v738
    %775 = vmatprep.subr.mxu0 0.0
    %776 = vmatpush2.msra.mxu0 0.0
    %777 = vmatprep.subr.mxu0 0.0
    %778 = vmatpush2.msra.mxu0 0.0
    %779 = vmatprep.subr.mxu0 0.0
    %780 = vmatpush2.msra.mxu0 0.0
    %781 = vmatprep.subr.mxu0 0.0
    %782 = vmatpush2.msra.mxu0 0.0
    %783 = vmatprep.subr.mxu0 0.0
    %784 = vmatpush2.msra.mxu0 0.0
    %785 = vmatprep.subr.mxu0 0.0
    %786 = vmatpush2.msra.mxu0 0.0
    %787 = vmatprep.subr.mxu0 0.0
    %788 = vmatpush2.msra.mxu0 0.0
    %789 = vmatprep.subr.mxu0 0.0
    %790 = vmatpush2.msra.mxu0 0.0
    %791 = vmatprep.subr.mxu0 0.0
    %792 = vmatpush2.msra.mxu0 0.0
    %793 = vmatprep.subr.mxu0 0.0
    %794 = vmatpush2.msra.mxu0 0.0
    %795 = vmatprep.subr.mxu0 0.0
    %796 = vmatpush2.msra.mxu0 0.0
    %797 = vmatprep.subr.mxu0 0.0
    %798 = vmatpush2.msra.mxu0 0.0
    %799 = vmatprep.subr.mxu0 0.0
    %800 = vmatpush2.msra.mxu0 0.0
    %801 = vmatprep.subr.mxu0 0.0
    %802 = vmatpush2.msra.mxu0 0.0
    %803 = vmatprep.subr.mxu0 0.0
    %804 = vmatpush2.msra.mxu0 0.0
    %805 = vmatprep.subr.mxu0 0.0
    %806 = vmatpush2.msra.mxu0 0.0
    %807 = vmatprep.mubr.f32.mxu0 0.0
    %808 = vmatmul.mubr.f32.gmra.mxu0 %v741
    %v809 = vpop.f32.mrf.mxu0
    %v810 = vadd.f32 0.0, %v809
    %v811 = vpop.f32.mrf.mxu0
    %812 = vdwg.mxu0
    %v813 = vmul.f32 %v734, %v659
    %v814 = vmul.f32 %v810, %v660
    %815 = vrot.lane.b32.xlu0 %v136, 112
    %v816 = vpop.permute.xlu0 %815
    %817 = vrot.lane.b32.xlu0 %v136, 80
    %v818 = vpop.permute.xlu0 %817
    %v819 = vsel %vm147, %v816, 0
    %v821 = vsel %vm147, %v818, 0
    %823 = vmatprep.subr.mxu0 0.0
    %824 = vmatpush1.xpose.msra.mxu0 0.0
    %825 = vmatprep.subr.mxu0 0.0
    %826 = vmatpush1.xpose.msra.mxu0 0.0
    %827 = vmatprep.subr.mxu0 0.0
    %828 = vmatpush1.xpose.msra.mxu0 0.0
    %829 = vmatprep.subr.mxu0 0.0
    %830 = vmatpush1.xpose.msra.mxu0 0.0
    %831 = vmatprep.subr.mxu0 0.0
    %832 = vmatpush1.xpose.msra.mxu0 0.0
    %833 = vmatprep.subr.mxu0 0.0
    %834 = vmatpush1.xpose.msra.mxu0 0.0
    %835 = vmatprep.subr.mxu0 0.0
    %836 = vmatpush1.xpose.msra.mxu0 0.0
    %837 = vmatprep.subr.mxu0 0.0
    %838 = vmatpush1.xpose.msra.mxu0 0.0
    %839 = vmatprep.subr.mxu0 0.0
    %840 = vmatpush1.xpose.msra.mxu0 0.0
    %841 = vmatprep.subr.mxu0 0.0
    %842 = vmatpush1.xpose.msra.mxu0 0.0
    %843 = vmatprep.subr.mxu0 0.0
    %844 = vmatpush1.xpose.msra.mxu0 0.0
    %845 = vmatprep.subr.mxu0 0.0
    %846 = vmatpush1.xpose.msra.mxu0 0.0
    %847 = vmatprep.subr.mxu0 0.0
    %848 = vmatpush1.xpose.msra.mxu0 0.0
    %849 = vmatprep.subr.mxu0 0.0
    %850 = vmatpush1.xpose.msra.mxu0 0.0
    %851 = vmatprep.subr.mxu0 0.0
    %852 = vmatpush1.xpose.msra.mxu0 0.0
    %853 = vmatprep.subr.mxu0 0.0
    %854 = vmatpush1.xpose.msra.mxu0 %v821
    %855 = vmatprep.subr.mxu0 0.0
    %856 = vmatpush2.xpose.msra.mxu0 0.0
    %857 = vmatprep.subr.mxu0 0.0
    %858 = vmatpush2.xpose.msra.mxu0 0.0
    %859 = vmatprep.subr.mxu0 0.0
    %860 = vmatpush2.xpose.msra.mxu0 0.0
    %861 = vmatprep.subr.mxu0 0.0
    %862 = vmatpush2.xpose.msra.mxu0 0.0
    %863 = vmatprep.subr.mxu0 0.0
    %864 = vmatpush2.xpose.msra.mxu0 0.0
    %865 = vmatprep.subr.mxu0 0.0
    %866 = vmatpush2.xpose.msra.mxu0 0.0
    %867 = vmatprep.subr.mxu0 0.0
    %868 = vmatpush2.xpose.msra.mxu0 0.0
    %869 = vmatprep.subr.mxu0 0.0
    %870 = vmatpush2.xpose.msra.mxu0 0.0
    %871 = vmatprep.subr.mxu0 0.0
    %872 = vmatpush2.xpose.msra.mxu0 0.0
    %873 = vmatprep.subr.mxu0 0.0
    %874 = vmatpush2.xpose.msra.mxu0 0.0
    %875 = vmatprep.subr.mxu0 0.0
    %876 = vmatpush2.xpose.msra.mxu0 0.0
    %877 = vmatprep.subr.mxu0 0.0
    %878 = vmatpush2.xpose.msra.mxu0 0.0
    %879 = vmatprep.subr.mxu0 0.0
    %880 = vmatpush2.xpose.msra.mxu0 0.0
    %881 = vmatprep.subr.mxu0 0.0
    %882 = vmatpush2.xpose.msra.mxu0 0.0
    %883 = vmatprep.subr.mxu0 0.0
    %884 = vmatpush2.xpose.msra.mxu0 0.0
    %885 = vmatprep.subr.mxu0 0.0
    %886 = vmatpush2.xpose.msra.mxu0 0.0
    %887 = vmatprep.mubr.f32.mxu0 0.0
    %888 = vmatmul.mubr.f32.gmra.mxu0 %v819
    %v889 = vpop.f32.mrf.mxu0
    %v890 = vadd.f32 0.0, %v889
    %v891 = vpop.f32.mrf.mxu0
    %892 = vdwg.mxu0
    %893 = vrot.lane.b32.xlu0 %v141, 112
    %v894 = vpop.permute.xlu0 %893
    %895 = vrot.lane.b32.xlu0 %v141, 80
    %v896 = vpop.permute.xlu0 %895
    %v897 = vsel %vm147, %v894, 0
    %v899 = vsel %vm147, %v896, 0
    %901 = vmatprep.subr.mxu0 0.0
    %902 = vmatpush1.xpose.msra.mxu0 0.0
    %903 = vmatprep.subr.mxu0 0.0
    %904 = vmatpush1.xpose.msra.mxu0 0.0
    %905 = vmatprep.subr.mxu0 0.0
    %906 = vmatpush1.xpose.msra.mxu0 0.0
    %907 = vmatprep.subr.mxu0 0.0
    %908 = vmatpush1.xpose.msra.mxu0 0.0
    %909 = vmatprep.subr.mxu0 0.0
    %910 = vmatpush1.xpose.msra.mxu0 0.0
    %911 = vmatprep.subr.mxu0 0.0
    %912 = vmatpush1.xpose.msra.mxu0 0.0
    %913 = vmatprep.subr.mxu0 0.0
    %914 = vmatpush1.xpose.msra.mxu0 0.0
    %915 = vmatprep.subr.mxu0 0.0
    %916 = vmatpush1.xpose.msra.mxu0 0.0
    %917 = vmatprep.subr.mxu0 0.0
    %918 = vmatpush1.xpose.msra.mxu0 0.0
    %919 = vmatprep.subr.mxu0 0.0
    %920 = vmatpush1.xpose.msra.mxu0 0.0
    %921 = vmatprep.subr.mxu0 0.0
    %922 = vmatpush1.xpose.msra.mxu0 0.0
    %923 = vmatprep.subr.mxu0 0.0
    %924 = vmatpush1.xpose.msra.mxu0 0.0
    %925 = vmatprep.subr.mxu0 0.0
    %926 = vmatpush1.xpose.msra.mxu0 0.0
    %927 = vmatprep.subr.mxu0 0.0
    %928 = vmatpush1.xpose.msra.mxu0 0.0
    %929 = vmatprep.subr.mxu0 0.0
    %930 = vmatpush1.xpose.msra.mxu0 0.0
    %931 = vmatprep.subr.mxu0 0.0
    %932 = vmatpush1.xpose.msra.mxu0 %v899
    %933 = vmatprep.subr.mxu0 0.0
    %934 = vmatpush2.xpose.msra.mxu0 0.0
    %935 = vmatprep.subr.mxu0 0.0
    %936 = vmatpush2.xpose.msra.mxu0 0.0
    %937 = vmatprep.subr.mxu0 0.0
    %938 = vmatpush2.xpose.msra.mxu0 0.0
    %939 = vmatprep.subr.mxu0 0.0
    %940 = vmatpush2.xpose.msra.mxu0 0.0
    %941 = vmatprep.subr.mxu0 0.0
    %942 = vmatpush2.xpose.msra.mxu0 0.0
    %943 = vmatprep.subr.mxu0 0.0
    %944 = vmatpush2.xpose.msra.mxu0 0.0
    %945 = vmatprep.subr.mxu0 0.0
    %946 = vmatpush2.xpose.msra.mxu0 0.0
    %947 = vmatprep.subr.mxu0 0.0
    %948 = vmatpush2.xpose.msra.mxu0 0.0
    %949 = vmatprep.subr.mxu0 0.0
    %950 = vmatpush2.xpose.msra.mxu0 0.0
    %951 = vmatprep.subr.mxu0 0.0
    %952 = vmatpush2.xpose.msra.mxu0 0.0
    %953 = vmatprep.subr.mxu0 0.0
    %954 = vmatpush2.xpose.msra.mxu0 0.0
    %955 = vmatprep.subr.mxu0 0.0
    %956 = vmatpush2.xpose.msra.mxu0 0.0
    %957 = vmatprep.subr.mxu0 0.0
    %958 = vmatpush2.xpose.msra.mxu0 0.0
    %959 = vmatprep.subr.mxu0 0.0
    %960 = vmatpush2.xpose.msra.mxu0 0.0
    %961 = vmatprep.subr.mxu0 0.0
    %962 = vmatpush2.xpose.msra.mxu0 0.0
    %963 = vmatprep.subr.mxu0 0.0
    %964 = vmatpush2.xpose.msra.mxu0 0.0
    %965 = vmatprep.mubr.f32.mxu0 0.0
    %966 = vmatmul.mubr.f32.gmra.mxu0 %v897
    %v967 = vpop.f32.mrf.mxu0
    %v968 = vadd.f32 0.0, %v967
    %v969 = vpop.f32.mrf.mxu0
    %970 = vdwg.mxu0
    %v971 = vsel %vm147, %v890, -inf
    %972 = vmax.xlane.f32.xlu0 %v971
    %v973 = vpop.xlane.xlu0 %972
    %v974 = vsel %vm147, %v968, -inf
    %975 = vmax.xlane.f32.xlu0 %v974
    %v976 = vpop.xlane.xlu0 %975
    %v977 = vsub.f32 %v890, %v973
    %v978 = vsub.f32 %v968, %v976
    %v979 = vmul.f32 %v977, 1.442695
    %v980 = vpow.pop %v979
    %v981 = vmul.f32 %v978, 1.442695
    %v982 = vpow.pop %v981
    %v983 = vsel %vm147, %v980, 0.0
    %984 = vadd.xlane.f32.xlu0 %v983
    %v985 = vpop.xlane.xlu0 %984
    %v986 = vsel %vm147, %v982, 0.0
    %987 = vadd.xlane.f32.xlu0 %v986
    %v988 = vpop.xlane.xlu0 %987
    %v989 = vrcp.pop %v985
    %v990 = vrcp.pop %v988
    %v991 = vmul.f32 %v985, %v989
    %v992 = vmul.f32 %v988, %v990
    %v993 = vsub.f32 2.0, %v991
    %v994 = vsub.f32 2.0, %v992
    %v995 = vmul.f32 %v989, %v993
    %v996 = vmul.f32 %v990, %v994
    %997 = vrot.lane.b32.xlu0 %v136, 48
    %v998 = vpop.permute.xlu0 %997
    %v1001 = vsel %vm147, %v980, 0
    %1003 = vmatprep.subr.mxu0 0.0
    %1004 = vmatpush1.msra.mxu0 0.0
    %1005 = vmatprep.subr.mxu0 0.0
    %1006 = vmatpush1.msra.mxu0 0.0
    %1007 = vmatprep.subr.mxu0 0.0
    %1008 = vmatpush1.msra.mxu0 0.0
    %1009 = vmatprep.subr.mxu0 0.0
    %1010 = vmatpush1.msra.mxu0 0.0
    %1011 = vmatprep.subr.mxu0 0.0
    %1012 = vmatpush1.msra.mxu0 0.0
    %1013 = vmatprep.subr.mxu0 0.0
    %1014 = vmatpush1.msra.mxu0 0.0
    %1015 = vmatprep.subr.mxu0 0.0
    %1016 = vmatpush1.msra.mxu0 0.0
    %1017 = vmatprep.subr.mxu0 0.0
    %1018 = vmatpush1.msra.mxu0 0.0
    %1019 = vmatprep.subr.mxu0 0.0
    %1020 = vmatpush1.msra.mxu0 0.0
    %1021 = vmatprep.subr.mxu0 0.0
    %1022 = vmatpush1.msra.mxu0 0.0
    %1023 = vmatprep.subr.mxu0 0.0
    %1024 = vmatpush1.msra.mxu0 0.0
    %1025 = vmatprep.subr.mxu0 0.0
    %1026 = vmatpush1.msra.mxu0 0.0
    %1027 = vmatprep.subr.mxu0 0.0
    %1028 = vmatpush1.msra.mxu0 0.0
    %1029 = vmatprep.subr.mxu0 0.0
    %1030 = vmatpush1.msra.mxu0 0.0
    %1031 = vmatprep.subr.mxu0 0.0
    %1032 = vmatpush1.msra.mxu0 0.0
    %1033 = vmatprep.subr.mxu0 0.0
    %1034 = vmatpush1.msra.mxu0 %v998
    %1035 = vmatprep.subr.mxu0 0.0
    %1036 = vmatpush2.msra.mxu0 0.0
    %1037 = vmatprep.subr.mxu0 0.0
    %1038 = vmatpush2.msra.mxu0 0.0
    %1039 = vmatprep.subr.mxu0 0.0
    %1040 = vmatpush2.msra.mxu0 0.0
    %1041 = vmatprep.subr.mxu0 0.0
    %1042 = vmatpush2.msra.mxu0 0.0
    %1043 = vmatprep.subr.mxu0 0.0
    %1044 = vmatpush2.msra.mxu0 0.0
    %1045 = vmatprep.subr.mxu0 0.0
    %1046 = vmatpush2.msra.mxu0 0.0
    %1047 = vmatprep.subr.mxu0 0.0
    %1048 = vmatpush2.msra.mxu0 0.0
    %1049 = vmatprep.subr.mxu0 0.0
    %1050 = vmatpush2.msra.mxu0 0.0
    %1051 = vmatprep.subr.mxu0 0.0
    %1052 = vmatpush2.msra.mxu0 0.0
    %1053 = vmatprep.subr.mxu0 0.0
    %1054 = vmatpush2.msra.mxu0 0.0
    %1055 = vmatprep.subr.mxu0 0.0
    %1056 = vmatpush2.msra.mxu0 0.0
    %1057 = vmatprep.subr.mxu0 0.0
    %1058 = vmatpush2.msra.mxu0 0.0
    %1059 = vmatprep.subr.mxu0 0.0
    %1060 = vmatpush2.msra.mxu0 0.0
    %1061 = vmatprep.subr.mxu0 0.0
    %1062 = vmatpush2.msra.mxu0 0.0
    %1063 = vmatprep.subr.mxu0 0.0
    %1064 = vmatpush2.msra.mxu0 0.0
    %1065 = vmatprep.subr.mxu0 0.0
    %1066 = vmatpush2.msra.mxu0 0.0
    %1067 = vmatprep.mubr.f32.mxu0 0.0
    %1068 = vmatmul.mubr.f32.gmra.mxu0 %v1001
    %v1069 = vpop.f32.mrf.mxu0
    %v1070 = vadd.f32 0.0, %v1069
    %v1071 = vpop.f32.mrf.mxu0
    %1072 = vdwg.mxu0
    %1073 = vrot.lane.b32.xlu0 %v141, 48
    %v1074 = vpop.permute.xlu0 %1073
    %v1077 = vsel %vm147, %v982, 0
    %1079 = vmatprep.subr.mxu0 0.0
    %1080 = vmatpush1.msra.mxu0 0.0
    %1081 = vmatprep.subr.mxu0 0.0
    %1082 = vmatpush1.msra.mxu0 0.0
    %1083 = vmatprep.subr.mxu0 0.0
    %1084 = vmatpush1.msra.mxu0 0.0
    %1085 = vmatprep.subr.mxu0 0.0
    %1086 = vmatpush1.msra.mxu0 0.0
    %1087 = vmatprep.subr.mxu0 0.0
    %1088 = vmatpush1.msra.mxu0 0.0
    %1089 = vmatprep.subr.mxu0 0.0
    %1090 = vmatpush1.msra.mxu0 0.0
    %1091 = vmatprep.subr.mxu0 0.0
    %1092 = vmatpush1.msra.mxu0 0.0
    %1093 = vmatprep.subr.mxu0 0.0
    %1094 = vmatpush1.msra.mxu0 0.0
    %1095 = vmatprep.subr.mxu0 0.0
    %1096 = vmatpush1.msra.mxu0 0.0
    %1097 = vmatprep.subr.mxu0 0.0
    %1098 = vmatpush1.msra.mxu0 0.0
    %1099 = vmatprep.subr.mxu0 0.0
    %1100 = vmatpush1.msra.mxu0 0.0
    %1101 = vmatprep.subr.mxu0 0.0
    %1102 = vmatpush1.msra.mxu0 0.0
    %1103 = vmatprep.subr.mxu0 0.0
    %1104 = vmatpush1.msra.mxu0 0.0
    %1105 = vmatprep.subr.mxu0 0.0
    %1106 = vmatpush1.msra.mxu0 0.0
    %1107 = vmatprep.subr.mxu0 0.0
    %1108 = vmatpush1.msra.mxu0 0.0
    %1109 = vmatprep.subr.mxu0 0.0
    %1110 = vmatpush1.msra.mxu0 %v1074
    %1111 = vmatprep.subr.mxu0 0.0
    %1112 = vmatpush2.msra.mxu0 0.0
    %1113 = vmatprep.subr.mxu0 0.0
    %1114 = vmatpush2.msra.mxu0 0.0
    %1115 = vmatprep.subr.mxu0 0.0
    %1116 = vmatpush2.msra.mxu0 0.0
    %1117 = vmatprep.subr.mxu0 0.0
    %1118 = vmatpush2.msra.mxu0 0.0
    %1119 = vmatprep.subr.mxu0 0.0
    %1120 = vmatpush2.msra.mxu0 0.0
    %1121 = vmatprep.subr.mxu0 0.0
    %1122 = vmatpush2.msra.mxu0 0.0
    %1123 = vmatprep.subr.mxu0 0.0
    %1124 = vmatpush2.msra.mxu0 0.0
    %1125 = vmatprep.subr.mxu0 0.0
    %1126 = vmatpush2.msra.mxu0 0.0
    %1127 = vmatprep.subr.mxu0 0.0
    %1128 = vmatpush2.msra.mxu0 0.0
    %1129 = vmatprep.subr.mxu0 0.0
    %1130 = vmatpush2.msra.mxu0 0.0
    %1131 = vmatprep.subr.mxu0 0.0
    %1132 = vmatpush2.msra.mxu0 0.0
    %1133 = vmatprep.subr.mxu0 0.0
    %1134 = vmatpush2.msra.mxu0 0.0
    %1135 = vmatprep.subr.mxu0 0.0
    %1136 = vmatpush2.msra.mxu0 0.0
    %1137 = vmatprep.subr.mxu0 0.0
    %1138 = vmatpush2.msra.mxu0 0.0
    %1139 = vmatprep.subr.mxu0 0.0
    %1140 = vmatpush2.msra.mxu0 0.0
    %1141 = vmatprep.subr.mxu0 0.0
    %1142 = vmatpush2.msra.mxu0 0.0
    %1143 = vmatprep.mubr.f32.mxu0 0.0
    %1144 = vmatmul.mubr.f32.gmra.mxu0 %v1077
    %v1145 = vpop.f32.mrf.mxu0
    %v1146 = vadd.f32 0.0, %v1145
    %v1147 = vpop.f32.mrf.mxu0
    %1148 = vdwg.mxu0
    %v1149 = vmul.f32 %v1070, %v995
    %v1150 = vmul.f32 %v1146, %v996
    %1151 = vrot.lane.b32.xlu0 %v136, 104
    %v1152 = vpop.permute.xlu0 %1151
    %1153 = vrot.lane.b32.xlu0 %v136, 72
    %v1154 = vpop.permute.xlu0 %1153
    %v1155 = vsel %vm147, %v1152, 0
    %v1157 = vsel %vm147, %v1154, 0
    %1159 = vmatprep.subr.mxu0 0.0
    %1160 = vmatpush1.xpose.msra.mxu0 0.0
    %1161 = vmatprep.subr.mxu0 0.0
    %1162 = vmatpush1.xpose.msra.mxu0 0.0
    %1163 = vmatprep.subr.mxu0 0.0
    %1164 = vmatpush1.xpose.msra.mxu0 0.0
    %1165 = vmatprep.subr.mxu0 0.0
    %1166 = vmatpush1.xpose.msra.mxu0 0.0
    %1167 = vmatprep.subr.mxu0 0.0
    %1168 = vmatpush1.xpose.msra.mxu0 0.0
    %1169 = vmatprep.subr.mxu0 0.0
    %1170 = vmatpush1.xpose.msra.mxu0 0.0
    %1171 = vmatprep.subr.mxu0 0.0
    %1172 = vmatpush1.xpose.msra.mxu0 0.0
    %1173 = vmatprep.subr.mxu0 0.0
    %1174 = vmatpush1.xpose.msra.mxu0 0.0
    %1175 = vmatprep.subr.mxu0 0.0
    %1176 = vmatpush1.xpose.msra.mxu0 0.0
    %1177 = vmatprep.subr.mxu0 0.0
    %1178 = vmatpush1.xpose.msra.mxu0 0.0
    %1179 = vmatprep.subr.mxu0 0.0
    %1180 = vmatpush1.xpose.msra.mxu0 0.0
    %1181 = vmatprep.subr.mxu0 0.0
    %1182 = vmatpush1.xpose.msra.mxu0 0.0
    %1183 = vmatprep.subr.mxu0 0.0
    %1184 = vmatpush1.xpose.msra.mxu0 0.0
    %1185 = vmatprep.subr.mxu0 0.0
    %1186 = vmatpush1.xpose.msra.mxu0 0.0
    %1187 = vmatprep.subr.mxu0 0.0
    %1188 = vmatpush1.xpose.msra.mxu0 0.0
    %1189 = vmatprep.subr.mxu0 0.0
    %1190 = vmatpush1.xpose.msra.mxu0 %v1157
    %1191 = vmatprep.subr.mxu0 0.0
    %1192 = vmatpush2.xpose.msra.mxu0 0.0
    %1193 = vmatprep.subr.mxu0 0.0
    %1194 = vmatpush2.xpose.msra.mxu0 0.0
    %1195 = vmatprep.subr.mxu0 0.0
    %1196 = vmatpush2.xpose.msra.mxu0 0.0
    %1197 = vmatprep.subr.mxu0 0.0
    %1198 = vmatpush2.xpose.msra.mxu0 0.0
    %1199 = vmatprep.subr.mxu0 0.0
    %1200 = vmatpush2.xpose.msra.mxu0 0.0
    %1201 = vmatprep.subr.mxu0 0.0
    %1202 = vmatpush2.xpose.msra.mxu0 0.0
    %1203 = vmatprep.subr.mxu0 0.0
    %1204 = vmatpush2.xpose.msra.mxu0 0.0
    %1205 = vmatprep.subr.mxu0 0.0
    %1206 = vmatpush2.xpose.msra.mxu0 0.0
    %1207 = vmatprep.subr.mxu0 0.0
    %1208 = vmatpush2.xpose.msra.mxu0 0.0
    %1209 = vmatprep.subr.mxu0 0.0
    %1210 = vmatpush2.xpose.msra.mxu0 0.0
    %1211 = vmatprep.subr.mxu0 0.0
    %1212 = vmatpush2.xpose.msra.mxu0 0.0
    %1213 = vmatprep.subr.mxu0 0.0
    %1214 = vmatpush2.xpose.msra.mxu0 0.0
    %1215 = vmatprep.subr.mxu0 0.0
    %1216 = vmatpush2.xpose.msra.mxu0 0.0
    %1217 = vmatprep.subr.mxu0 0.0
    %1218 = vmatpush2.xpose.msra.mxu0 0.0
    %1219 = vmatprep.subr.mxu0 0.0
    %1220 = vmatpush2.xpose.msra.mxu0 0.0
    %1221 = vmatprep.subr.mxu0 0.0
    %1222 = vmatpush2.xpose.msra.mxu0 0.0
    %1223 = vmatprep.mubr.f32.mxu0 0.0
    %1224 = vmatmul.mubr.f32.gmra.mxu0 %v1155
    %v1225 = vpop.f32.mrf.mxu0
    %v1226 = vadd.f32 0.0, %v1225
    %v1227 = vpop.f32.mrf.mxu0
    %1228 = vdwg.mxu0
    %1229 = vrot.lane.b32.xlu0 %v141, 104
    %v1230 = vpop.permute.xlu0 %1229
    %1231 = vrot.lane.b32.xlu0 %v141, 72
    %v1232 = vpop.permute.xlu0 %1231
    %v1233 = vsel %vm147, %v1230, 0
    %v1235 = vsel %vm147, %v1232, 0
    %1237 = vmatprep.subr.mxu0 0.0
    %1238 = vmatpush1.xpose.msra.mxu0 0.0
    %1239 = vmatprep.subr.mxu0 0.0
    %1240 = vmatpush1.xpose.msra.mxu0 0.0
    %1241 = vmatprep.subr.mxu0 0.0
    %1242 = vmatpush1.xpose.msra.mxu0 0.0
    %1243 = vmatprep.subr.mxu0 0.0
    %1244 = vmatpush1.xpose.msra.mxu0 0.0
    %1245 = vmatprep.subr.mxu0 0.0
    %1246 = vmatpush1.xpose.msra.mxu0 0.0
    %1247 = vmatprep.subr.mxu0 0.0
    %1248 = vmatpush1.xpose.msra.mxu0 0.0
    %1249 = vmatprep.subr.mxu0 0.0
    %1250 = vmatpush1.xpose.msra.mxu0 0.0
    %1251 = vmatprep.subr.mxu0 0.0
    %1252 = vmatpush1.xpose.msra.mxu0 0.0
    %1253 = vmatprep.subr.mxu0 0.0
    %1254 = vmatpush1.xpose.msra.mxu0 0.0
    %1255 = vmatprep.subr.mxu0 0.0
    %1256 = vmatpush1.xpose.msra.mxu0 0.0
    %1257 = vmatprep.subr.mxu0 0.0
    %1258 = vmatpush1.xpose.msra.mxu0 0.0
    %1259 = vmatprep.subr.mxu0 0.0
    %1260 = vmatpush1.xpose.msra.mxu0 0.0
    %1261 = vmatprep.subr.mxu0 0.0
    %1262 = vmatpush1.xpose.msra.mxu0 0.0
    %1263 = vmatprep.subr.mxu0 0.0
    %1264 = vmatpush1.xpose.msra.mxu0 0.0
    %1265 = vmatprep.subr.mxu0 0.0
    %1266 = vmatpush1.xpose.msra.mxu0 0.0
    %1267 = vmatprep.subr.mxu0 0.0
    %1268 = vmatpush1.xpose.msra.mxu0 %v1235
    %1269 = vmatprep.subr.mxu0 0.0
    %1270 = vmatpush2.xpose.msra.mxu0 0.0
    %1271 = vmatprep.subr.mxu0 0.0
    %1272 = vmatpush2.xpose.msra.mxu0 0.0
    %1273 = vmatprep.subr.mxu0 0.0
    %1274 = vmatpush2.xpose.msra.mxu0 0.0
    %1275 = vmatprep.subr.mxu0 0.0
    %1276 = vmatpush2.xpose.msra.mxu0 0.0
    %1277 = vmatprep.subr.mxu0 0.0
    %1278 = vmatpush2.xpose.msra.mxu0 0.0
    %1279 = vmatprep.subr.mxu0 0.0
    %1280 = vmatpush2.xpose.msra.mxu0 0.0
    %1281 = vmatprep.subr.mxu0 0.0
    %1282 = vmatpush2.xpose.msra.mxu0 0.0
    %1283 = vmatprep.subr.mxu0 0.0
    %1284 = vmatpush2.xpose.msra.mxu0 0.0
    %1285 = vmatprep.subr.mxu0 0.0
    %1286 = vmatpush2.xpose.msra.mxu0 0.0
    %1287 = vmatprep.subr.mxu0 0.0
    %1288 = vmatpush2.xpose.msra.mxu0 0.0
    %1289 = vmatprep.subr.mxu0 0.0
    %1290 = vmatpush2.xpose.msra.mxu0 0.0
    %1291 = vmatprep.subr.mxu0 0.0
    %1292 = vmatpush2.xpose.msra.mxu0 0.0
    %1293 = vmatprep.subr.mxu0 0.0
    %1294 = vmatpush2.xpose.msra.mxu0 0.0
    %1295 = vmatprep.subr.mxu0 0.0
    %1296 = vmatpush2.xpose.msra.mxu0 0.0
    %1297 = vmatprep.subr.mxu0 0.0
    %1298 = vmatpush2.xpose.msra.mxu0 0.0
    %1299 = vmatprep.subr.mxu0 0.0
    %1300 = vmatpush2.xpose.msra.mxu0 0.0
    %1301 = vmatprep.mubr.f32.mxu0 0.0
    %1302 = vmatmul.mubr.f32.gmra.mxu0 %v1233
    %v1303 = vpop.f32.mrf.mxu0
    %v1304 = vadd.f32 0.0, %v1303
    %v1305 = vpop.f32.mrf.mxu0
    %1306 = vdwg.mxu0
    %v1307 = vsel %vm147, %v1226, -inf
    %1308 = vmax.xlane.f32.xlu0 %v1307
    %v1309 = vpop.xlane.xlu0 %1308
    %v1310 = vsel %vm147, %v1304, -inf
    %1311 = vmax.xlane.f32.xlu0 %v1310
    %v1312 = vpop.xlane.xlu0 %1311
    %v1313 = vsub.f32 %v1226, %v1309
    %v1314 = vsub.f32 %v1304, %v1312
    %v1315 = vmul.f32 %v1313, 1.442695
    %v1316 = vpow.pop %v1315
    %v1317 = vmul.f32 %v1314, 1.442695
    %v1318 = vpow.pop %v1317
    %v1319 = vsel %vm147, %v1316, 0.0
    %1320 = vadd.xlane.f32.xlu0 %v1319
    %v1321 = vpop.xlane.xlu0 %1320
    %v1322 = vsel %vm147, %v1318, 0.0
    %1323 = vadd.xlane.f32.xlu0 %v1322
    %v1324 = vpop.xlane.xlu0 %1323
    %v1325 = vrcp.pop %v1321
    %v1326 = vrcp.pop %v1324
    %v1327 = vmul.f32 %v1321, %v1325
    %v1328 = vmul.f32 %v1324, %v1326
    %v1329 = vsub.f32 2.0, %v1327
    %v1330 = vsub.f32 2.0, %v1328
    %v1331 = vmul.f32 %v1325, %v1329
    %v1332 = vmul.f32 %v1326, %v1330
    %1333 = vrot.lane.b32.xlu0 %v136, 40
    %v1334 = vpop.permute.xlu0 %1333
    %v1337 = vsel %vm147, %v1316, 0
    %1339 = vmatprep.subr.mxu0 0.0
    %1340 = vmatpush1.msra.mxu0 0.0
    %1341 = vmatprep.subr.mxu0 0.0
    %1342 = vmatpush1.msra.mxu0 0.0
    %1343 = vmatprep.subr.mxu0 0.0
    %1344 = vmatpush1.msra.mxu0 0.0
    %1345 = vmatprep.subr.mxu0 0.0
    %1346 = vmatpush1.msra.mxu0 0.0
    %1347 = vmatprep.subr.mxu0 0.0
    %1348 = vmatpush1.msra.mxu0 0.0
    %1349 = vmatprep.subr.mxu0 0.0
    %1350 = vmatpush1.msra.mxu0 0.0
    %1351 = vmatprep.subr.mxu0 0.0
    %1352 = vmatpush1.msra.mxu0 0.0
    %1353 = vmatprep.subr.mxu0 0.0
    %1354 = vmatpush1.msra.mxu0 0.0
    %1355 = vmatprep.subr.mxu0 0.0
    %1356 = vmatpush1.msra.mxu0 0.0
    %1357 = vmatprep.subr.mxu0 0.0
    %1358 = vmatpush1.msra.mxu0 0.0
    %1359 = vmatprep.subr.mxu0 0.0
    %1360 = vmatpush1.msra.mxu0 0.0
    %1361 = vmatprep.subr.mxu0 0.0
    %1362 = vmatpush1.msra.mxu0 0.0
    %1363 = vmatprep.subr.mxu0 0.0
    %1364 = vmatpush1.msra.mxu0 0.0
    %1365 = vmatprep.subr.mxu0 0.0
    %1366 = vmatpush1.msra.mxu0 0.0
    %1367 = vmatprep.subr.mxu0 0.0
    %1368 = vmatpush1.msra.mxu0 0.0
    %1369 = vmatprep.subr.mxu0 0.0
    %1370 = vmatpush1.msra.mxu0 %v1334
    %1371 = vmatprep.subr.mxu0 0.0
    %1372 = vmatpush2.msra.mxu0 0.0
    %1373 = vmatprep.subr.mxu0 0.0
    %1374 = vmatpush2.msra.mxu0 0.0
    %1375 = vmatprep.subr.mxu0 0.0
    %1376 = vmatpush2.msra.mxu0 0.0
    %1377 = vmatprep.subr.mxu0 0.0
    %1378 = vmatpush2.msra.mxu0 0.0
    %1379 = vmatprep.subr.mxu0 0.0
    %1380 = vmatpush2.msra.mxu0 0.0
    %1381 = vmatprep.subr.mxu0 0.0
    %1382 = vmatpush2.msra.mxu0 0.0
    %1383 = vmatprep.subr.mxu0 0.0
    %1384 = vmatpush2.msra.mxu0 0.0
    %1385 = vmatprep.subr.mxu0 0.0
    %1386 = vmatpush2.msra.mxu0 0.0
    %1387 = vmatprep.subr.mxu0 0.0
    %1388 = vmatpush2.msra.mxu0 0.0
    %1389 = vmatprep.subr.mxu0 0.0
    %1390 = vmatpush2.msra.mxu0 0.0
    %1391 = vmatprep.subr.mxu0 0.0
    %1392 = vmatpush2.msra.mxu0 0.0
    %1393 = vmatprep.subr.mxu0 0.0
    %1394 = vmatpush2.msra.mxu0 0.0
    %1395 = vmatprep.subr.mxu0 0.0
    %1396 = vmatpush2.msra.mxu0 0.0
    %1397 = vmatprep.subr.mxu0 0.0
    %1398 = vmatpush2.msra.mxu0 0.0
    %1399 = vmatprep.subr.mxu0 0.0
    %1400 = vmatpush2.msra.mxu0 0.0
    %1401 = vmatprep.subr.mxu0 0.0
    %1402 = vmatpush2.msra.mxu0 0.0
    %1403 = vmatprep.mubr.f32.mxu0 0.0
    %1404 = vmatmul.mubr.f32.gmra.mxu0 %v1337
    %v1405 = vpop.f32.mrf.mxu0
    %v1406 = vadd.f32 0.0, %v1405
    %v1407 = vpop.f32.mrf.mxu0
    %1408 = vdwg.mxu0
    %1409 = vrot.lane.b32.xlu0 %v141, 40
    %v1410 = vpop.permute.xlu0 %1409
    %v1413 = vsel %vm147, %v1318, 0
    %1415 = vmatprep.subr.mxu0 0.0
    %1416 = vmatpush1.msra.mxu0 0.0
    %1417 = vmatprep.subr.mxu0 0.0
    %1418 = vmatpush1.msra.mxu0 0.0
    %1419 = vmatprep.subr.mxu0 0.0
    %1420 = vmatpush1.msra.mxu0 0.0
    %1421 = vmatprep.subr.mxu0 0.0
    %1422 = vmatpush1.msra.mxu0 0.0
    %1423 = vmatprep.subr.mxu0 0.0
    %1424 = vmatpush1.msra.mxu0 0.0
    %1425 = vmatprep.subr.mxu0 0.0
    %1426 = vmatpush1.msra.mxu0 0.0
    %1427 = vmatprep.subr.mxu0 0.0
    %1428 = vmatpush1.msra.mxu0 0.0
    %1429 = vmatprep.subr.mxu0 0.0
    %1430 = vmatpush1.msra.mxu0 0.0
    %1431 = vmatprep.subr.mxu0 0.0
    %1432 = vmatpush1.msra.mxu0 0.0
    %1433 = vmatprep.subr.mxu0 0.0
    %1434 = vmatpush1.msra.mxu0 0.0
    %1435 = vmatprep.subr.mxu0 0.0
    %1436 = vmatpush1.msra.mxu0 0.0
    %1437 = vmatprep.subr.mxu0 0.0
    %1438 = vmatpush1.msra.mxu0 0.0
    %1439 = vmatprep.subr.mxu0 0.0
    %1440 = vmatpush1.msra.mxu0 0.0
    %1441 = vmatprep.subr.mxu0 0.0
    %1442 = vmatpush1.msra.mxu0 0.0
    %1443 = vmatprep.subr.mxu0 0.0
    %1444 = vmatpush1.msra.mxu0 0.0
    %1445 = vmatprep.subr.mxu0 0.0
    %1446 = vmatpush1.msra.mxu0 %v1410
    %1447 = vmatprep.subr.mxu0 0.0
    %1448 = vmatpush2.msra.mxu0 0.0
    %1449 = vmatprep.subr.mxu0 0.0
    %1450 = vmatpush2.msra.mxu0 0.0
    %1451 = vmatprep.subr.mxu0 0.0
    %1452 = vmatpush2.msra.mxu0 0.0
    %1453 = vmatprep.subr.mxu0 0.0
    %1454 = vmatpush2.msra.mxu0 0.0
    %1455 = vmatprep.subr.mxu0 0.0
    %1456 = vmatpush2.msra.mxu0 0.0
    %1457 = vmatprep.subr.mxu0 0.0
    %1458 = vmatpush2.msra.mxu0 0.0
    %1459 = vmatprep.subr.mxu0 0.0
    %1460 = vmatpush2.msra.mxu0 0.0
    %1461 = vmatprep.subr.mxu0 0.0
    %1462 = vmatpush2.msra.mxu0 0.0
    %1463 = vmatprep.subr.mxu0 0.0
    %1464 = vmatpush2.msra.mxu0 0.0
    %1465 = vmatprep.subr.mxu0 0.0
    %1466 = vmatpush2.msra.mxu0 0.0
    %1467 = vmatprep.subr.mxu0 0.0
    %1468 = vmatpush2.msra.mxu0 0.0
    %1469 = vmatprep.subr.mxu0 0.0
    %1470 = vmatpush2.msra.mxu0 0.0
    %1471 = vmatprep.subr.mxu0 0.0
    %1472 = vmatpush2.msra.mxu0 0.0
    %1473 = vmatprep.subr.mxu0 0.0
    %1474 = vmatpush2.msra.mxu0 0.0
    %1475 = vmatprep.subr.mxu0 0.0
    %1476 = vmatpush2.msra.mxu0 0.0
    %1477 = vmatprep.subr.mxu0 0.0
    %1478 = vmatpush2.msra.mxu0 0.0
    %1479 = vmatprep.mubr.f32.mxu0 0.0
    %1480 = vmatmul.mubr.f32.gmra.mxu0 %v1413
    %v1481 = vpop.f32.mrf.mxu0
    %v1482 = vadd.f32 0.0, %v1481
    %v1483 = vpop.f32.mrf.mxu0
    %1484 = vdwg.mxu0
    %v1485 = vmul.f32 %v1406, %v1331
    %v1486 = vmul.f32 %v1482, %v1332
    %1489 = vrot.lane.b32.xlu0 %v813, 8
    %v1490 = vpop.permute.xlu0 %1489
    %1491 = vrot.lane.b32.xlu0 %v814, 8
    %v1492 = vpop.permute.xlu0 %1491
    %1497 = vrot.lane.b32.xlu0 %v1149, 16
    %v1498 = vpop.permute.xlu0 %1497
    %1499 = vrot.lane.b32.xlu0 %v1150, 16
    %v1500 = vpop.permute.xlu0 %1499
    %1505 = vrot.lane.b32.xlu0 %v1485, 24
    %v1506 = vpop.permute.xlu0 %1505
    %1507 = vrot.lane.b32.xlu0 %v1486, 24
    %v1508 = vpop.permute.xlu0 %1507
    %v1511 = vsel %vm147, %v477, %v1490
    %v1512 = vsel %vm147, %v478, %v1492
    %vm1513 = vcmask 130048
    %v1514 = vsel %vm1513, %v1511, %v1498
    %v1515 = vsel %vm1513, %v1512, %v1500
    %vm1516 = vcmask 195584
    %v1517 = vsel %vm1516, %v1514, %v1506
    %v1518 = vsel %vm1516, %v1515, %v1508
    %v1519 = vld [vmem:[#allocation7] sm:$0xff]
    %v1520 = vld [vmem:[#allocation7 + $0x8] sm:$0xff]
    %v1521 = vld [vmem:[#allocation7 + $0x10] sm:$0xff]
    %v1522 = vld [vmem:[#allocation7 + $0x18] sm:$0xff]
    %v1524 = vsel %vm62, %v1517, 0
    %v1527 = vsel %vm62, %v1518, 0
    %1529 = vmatprep.subr.mxu0 0.0
    %1530 = vmatpush1.msra.mxu0 0.0
    %1531 = vmatprep.subr.mxu0 0.0
    %1532 = vmatpush1.msra.mxu0 0.0
    %1533 = vmatprep.subr.mxu0 0.0
    %1534 = vmatpush1.msra.mxu0 0.0
    %1535 = vmatprep.subr.mxu0 0.0
    %1536 = vmatpush1.msra.mxu0 0.0
    %1537 = vmatprep.subr.mxu0 0.0
    %1538 = vmatpush1.msra.mxu0 0.0
    %1539 = vmatprep.subr.mxu0 0.0
    %1540 = vmatpush1.msra.mxu0 0.0
    %1541 = vmatprep.subr.mxu0 0.0
    %1542 = vmatpush1.msra.mxu0 0.0
    %1543 = vmatprep.subr.mxu0 0.0
    %1544 = vmatpush1.msra.mxu0 0.0
    %1545 = vmatprep.subr.mxu0 0.0
    %1546 = vmatpush1.msra.mxu0 0.0
    %1547 = vmatprep.subr.mxu0 0.0
    %1548 = vmatpush1.msra.mxu0 0.0
    %1549 = vmatprep.subr.mxu0 0.0
    %1550 = vmatpush1.msra.mxu0 0.0
    %1551 = vmatprep.subr.mxu0 0.0
    %1552 = vmatpush1.msra.mxu0 0.0
    %1553 = vmatprep.subr.mxu0 0.0
    %1554 = vmatpush1.msra.mxu0 %v1522
    %1555 = vmatprep.subr.mxu0 0.0
    %1556 = vmatpush1.msra.mxu0 %v1521
    %1557 = vmatprep.subr.mxu0 0.0
    %1558 = vmatpush1.msra.mxu0 %v1520
    %1559 = vmatprep.subr.mxu0 0.0
    %1560 = vmatpush1.msra.mxu0 %v1519
    %1561 = vmatprep.subr.mxu0 0.0
    %1562 = vmatpush2.msra.mxu0 0.0
    %1563 = vmatprep.subr.mxu0 0.0
    %1564 = vmatpush2.msra.mxu0 0.0
    %1565 = vmatprep.subr.mxu0 0.0
    %1566 = vmatpush2.msra.mxu0 0.0
    %1567 = vmatprep.subr.mxu0 0.0
    %1568 = vmatpush2.msra.mxu0 0.0
    %1569 = vmatprep.subr.mxu0 0.0
    %1570 = vmatpush2.msra.mxu0 0.0
    %1571 = vmatprep.subr.mxu0 0.0
    %1572 = vmatpush2.msra.mxu0 0.0
    %1573 = vmatprep.subr.mxu0 0.0
    %1574 = vmatpush2.msra.mxu0 0.0
    %1575 = vmatprep.subr.mxu0 0.0
    %1576 = vmatpush2.msra.mxu0 0.0
    %1577 = vmatprep.subr.mxu0 0.0
    %1578 = vmatpush2.msra.mxu0 0.0
    %1579 = vmatprep.subr.mxu0 0.0
    %1580 = vmatpush2.msra.mxu0 0.0
    %1581 = vmatprep.subr.mxu0 0.0
    %1582 = vmatpush2.msra.mxu0 0.0
    %1583 = vmatprep.subr.mxu0 0.0
    %1584 = vmatpush2.msra.mxu0 0.0
    %1585 = vmatprep.subr.mxu0 0.0
    %1586 = vmatpush2.msra.mxu0 0.0
    %1587 = vmatprep.subr.mxu0 0.0
    %1588 = vmatpush2.msra.mxu0 0.0
    %1589 = vmatprep.subr.mxu0 0.0
    %1590 = vmatpush2.msra.mxu0 0.0
    %1591 = vmatprep.subr.mxu0 0.0
    %1592 = vmatpush2.msra.mxu0 0.0
    %1593 = vmatprep.mubr.f32.mxu0 0.0
    %1594 = vmatmul.mubr.f32.gmra.mxu0 %v1524
    %v1595 = vpop.f32.mrf.mxu0
    %v1596 = vadd.f32 0.0, %v1595
    %v1597 = vpop.f32.mrf.mxu0
    %1598 = vmatprep.mubr.f32.mxu0 0.0
    %1599 = vmatmul.mubr.f32.gmra.mxu0 %v1527
    %v1600 = vpop.f32.mrf.mxu0
    %v1601 = vadd.f32 0.0, %v1600
    %v1602 = vpop.f32.mrf.mxu0
    %1603 = vdwg.mxu0
    %1604 = vst.msk [vmem:[#allocation8] sm:$0xff] %vm62, %v1596
    %1605 = vst.msk [vmem:[#allocation8 + $0x8] sm:$0xff] %vm62, %v1601
    // Predicated region
    $region26: #{tpu_custom_call.1} parent=1 // pred_check
      _
    $region27: #{tpu_custom_call.1} parent=1 // pred_check_branch
      %1607 = sbr.rel (0) target = $region29
    $region28: #{tpu_custom_call.1} parent=1 // pred_region
      %s1609 = ssub.s32 256, 256
      %1610 = vsyncadd [#allocation4], %s1609
      %s1611 = sshll.u32 [#allocation8], 4
      %s1612 = int_to_ptr.vmem [resolvable:$true] %s1611
      %1617 = dma.vmem_to_hbm [thread:$0]  %s1612, 256, %s3, [#allocation4], 128, 128, 8
    $region29: #{tpu_custom_call.1} parent=1 // pred_fallthru
      _
    // Predicated region
    $region30: #{tpu_custom_call.1} parent=1 // pred_check
      _
    $region31: #{tpu_custom_call.1} parent=1 // pred_check_branch
      %1619 = sbr.rel (0) target = $region33
    $region32: #{tpu_custom_call.1} parent=1 // pred_region
      %1620 = dma.done [#allocation4], 256
    $region33: #{tpu_custom_call.1} parent=1 // pred_fallthru
      _
    %1621 = vsyncpa [#allocation3], 1
    %1622 = vsyncpa [#allocation6], 1
    %1623 = vsyncpa [#allocation4], 1

</llo_original>
